<compile_context>
chip_gen: v5e
topology: v5e:2x2
jax: 0.10.0
libtpu: 0.0.40
codegen_flags: <defaults>
</compile_context>

<pallas_src>
import jax
import jax.numpy as jnp
from jax.experimental import pallas as pl
from jax.experimental.pallas import tpu as pltpu

# ----------------------------- model constants (small stand-in sizes) ---------
B          = 2      # batch
GENDER_DIM = 32     # gender_encoder output width
C_BB0      = 8      # backbone0 output channels            (stand-in)
C_V0       = 16     # channels entering vit_block0         (stand-in for 512)
C_V1       = 32     # channels entering vit_block1         (stand-in for 1024)
C_BB3      = 48     # backbone3 output channels            (stand-in for 2048)
ATTN_DIM   = 128    # ViT-block attention dim (128-multiple so fused-weight
                    # lane slices are tile aligned; stand-in for 768)
FC_OUT     = 1      # final fc output
LN_EPS     = 1e-5


# ----------------------------- Pallas kernel ----------------------------------
def _vit_attn_kernel(x_ref, cls_in_ref, g3_ref,
                     wqkv_ref, lnw_ref, lnb_ref, wfc2_ref,
                     cls_out_ref, attn_ref):
    """Gender-conditioned cls-query attention for ONE batch element.

    x_ref       : (1, L, C)  bf16  spatial tokens (L = H*W, token-major)
    cls_in_ref  : (1, 1, C)  bf16  cls token (avg-pooled in f32 in the wrapper)
    g3_ref      : (1, 3, D)  f32   gender halves of the q/k/v Linears (hoisted)
    wqkv_ref    : (C, 3D)    bf16  fused token halves of the q/k/v weights
    lnw/lnb_ref : (1, D)     f32   shared LayerNorm affine
    wfc2_ref    : (D, C)     bf16  fc2 (1x1-conv) weight
    cls_out_ref : (1, 1, C)  f32   fc2(cls attention output)
    attn_ref    : (1, 1, L)  f32   cls-query attention over the spatial tokens
    """
    D = lnw_ref.shape[1]
    scale = float(D) ** -0.5

    x = x_ref[0]                                    # (L, C) bf16
    cls16 = cls_in_ref[0]                           # (1, C) bf16
    g3 = g3_ref[0]                                  # (3, D) f32
    gq, gk, gv = g3[0:1], g3[1:2], g3[2:3]
    lnw = lnw_ref[...]
    lnb = lnb_ref[...]
    wqkv = wqkv_ref[...]                            # (C, 3D) bf16
    wkv = wqkv[:, D:]                               # (C, 2D) static lane slice

    def relu_ln(h):                                 # LayerNorm(ReLU(h)); stats f32
        h = jnp.maximum(h, 0.0)
        mu = jnp.mean(h, axis=-1, keepdims=True)
        var = jnp.mean(jnp.square(h - mu), axis=-1, keepdims=True)
        return (h - mu) * jax.lax.rsqrt(var + LN_EPS) * lnw + lnb

    # cls row: ONE (1,C)@(C,3D) matmul, lane-aligned static slices -> q/k/v rows.
    qkv_c = jnp.dot(cls16, wqkv, preferred_element_type=jnp.float32)    # (1, 3D)
    q_cls = relu_ln(qkv_c[:, :D] + gq) * scale      # (1, D) f32; 1/sqrt(D) folded in
    k_cls = relu_ln(qkv_c[:, D:2 * D] + gk)         # (1, D) f32
    v_cls = relu_ln(qkv_c[:, 2 * D:] + gv)          # (1, D) f32

    # Spatial tokens: ONE (L,C)@(C,2D) matmul; k/v kept in bf16 (they only feed
    # bf16 MXU matmuls), halving VMEM / vreg pressure vs f32.
    kv_x = jnp.dot(x, wkv, preferred_element_type=jnp.float32)          # (L, 2D)
    k_x = relu_ln(kv_x[:, :D] + gk).astype(jnp.bfloat16)                # (L, D) bf16
    v_x = relu_ln(kv_x[:, D:] + gv).astype(jnp.bfloat16)                # (L, D) bf16

    # Logits for the cls query; NT contraction over D (no k transpose at these
    # shapes -- re-verify with pl.lower_as_mlir at production L).
    logit_x = jax.lax.dot_general(q_cls.astype(jnp.bfloat16), k_x,
                                  (((1,), (1,)), ((), ())),
                                  preferred_element_type=jnp.float32)   # (1, L)
    logit_c = jnp.sum(q_cls * k_cls, axis=-1, keepdims=True)            # (1, 1)

    # Numerically stable softmax over the (cls, spatial) row; exact reciprocal
    # (approx=True would drop ~2^-12 of probability mass).
    m = jnp.maximum(jnp.max(logit_x, axis=-1, keepdims=True), logit_c)
    e_x = jnp.exp(logit_x - m)                                          # (1, L)
    e_c = jnp.exp(logit_c - m)                                          # (1, 1)
    inv = 1.0 / (e_c + jnp.sum(e_x, axis=-1, keepdims=True))
    a_x = e_x * inv                                                     # (1, L)
    a_c = e_c * inv                                                     # (1, 1)

    # Attention output for the cls query only, then fc2 back to channel space.
    feat = a_c * v_cls + jnp.dot(a_x.astype(jnp.bfloat16), v_x,
                                 preferred_element_type=jnp.float32)    # (1, D)
    cls_out_ref[0] = jnp.dot(feat.astype(jnp.bfloat16), wfc2_ref[...],
                             preferred_element_type=jnp.float32)        # (1, C)
    attn_ref[0] = a_x                                                   # (1, L)


def _const_spec(shape):
    """BlockSpec for a grid-invariant (weight) input: single-buffered if the
    installed jax supports pipeline_mode=pl.Buffered; plain spec otherwise."""
    idx = lambda *_: (0,) * len(shape)
    try:
        return pl.BlockSpec(shape, idx, pipeline_mode=pl.Buffered(1))
    except Exception:                      # older jax without pipeline_mode
        return pl.BlockSpec(shape, idx)


def vit_block_forward(x_nhwc, gender_encode, p):
    """Stand-in for getViTBlock(...)(x, gender): returns (cls_token, attn1, attn2)."""
    b, h, w, c = x_nhwc.shape
    L = h * w
    D = p["ln_w"].shape[0]

    # Backbone glue is already channel-last, so the kernel input is a reshape
    # (no per-call NCHW->NHWC transpose).
    x_tok = x_nhwc.reshape(b, L, c)
    # cls token = AdaptiveAvgPool2d(1); pooled in f32 here, not inside the kernel.
    cls_tok = jnp.mean(x_tok, axis=1, keepdims=True)                    # (b, 1, c)
    # Gender halves of q/k/v hoisted out of the kernel (one tiny einsum per call).
    g3 = jnp.einsum("bg,pgd->bpd", gender_encode, p["wg_qkv"])          # (b, 3, D)

    bf16 = lambda a: a.astype(jnp.bfloat16)

    cls_vec, attn_row = pl.pallas_call(
        _vit_attn_kernel,
        grid=(b,),
        in_specs=[
            pl.BlockSpec((1, L, c), lambda i: (i, 0, 0)),
            pl.BlockSpec((1, 1, c), lambda i: (i, 0, 0)),
            pl.BlockSpec((1, 3, D), lambda i: (i, 0, 0)),
            _const_spec((c, 3 * D)),      # fused q/k/v token weights
            _const_spec((1, D)),          # LayerNorm gamma
            _const_spec((1, D)),          # LayerNorm beta
            _const_spec((D, c)),          # fc2 weight
        ],
        out_specs=[
            pl.BlockSpec((1, 1, c), lambda i: (i, 0, 0)),
            pl.BlockSpec((1, 1, L), lambda i: (i, 0, 0)),
        ],
        out_shape=[
            jax.ShapeDtypeStruct((b, 1, c), jnp.float32),
            jax.ShapeDtypeStruct((b, 1, L), jnp.float32),
        ],
        compiler_params=pltpu.CompilerParams(
            dimension_semantics=("parallel",),
            # <= ~48 MiB leaves headroom on v7x (64 MiB/TC); v5e/v6e have 128 MiB.
            vmem_limit_bytes=48 * 1024 * 1024),
    )(bf16(x_tok), bf16(cls_tok), g3,
      bf16(p["wqkv_x"]), p["ln_w"].reshape(1, D), p["ln_b"].reshape(1, D),
      bf16(p["wfc2"]))

    cls_vec = cls_vec.reshape(b, c)
    attn_map = attn_row.reshape(b, 1, h, w)   # cls-query attention over H*W tokens
    # TODO(synk): getViTBlock's depth-2 internals are not in the provided source;
    # a single gender-conditioned attention layer stands in, so the same
    # cls-attention map is returned for both per-layer attention outputs.
    return cls_vec, attn_map, attn_map


# ----------------------------- plain-JAX glue (all NHWC) -----------------------
def conv1x1(x, w):          # x: (B, H, W, Cin), w: (Cin, Cout)
    return jnp.einsum("bhwc,co->bhwo", x, w)


def avgpool2(x):            # 2x2 stride-2 average pool, NHWC
    b, h, w, c = x.shape
    return x.reshape(b, h // 2, 2, w // 2, 2, c).mean(axis=(2, 4))


def spatial_attn_stub(x):   # stand-in for backbone attn0 / attn1 modules, NHWC
    a = jax.nn.sigmoid(jnp.mean(x, axis=-1, keepdims=True))             # (b,h,w,1)
    return a * x, a


def gender_branch(params, gender):   # ReLU(BatchNorm1d(Linear(gender))) — tiny, plain XLA
    ge = jnp.dot(gender, params["gender_w"]) + params["gender_b"]
    ge = ((ge - params["bn_mean"]) / jnp.sqrt(params["bn_var"] + 1e-5)
          * params["bn_w"] + params["bn_b"])
    return jnp.maximum(ge, 0.0)


# ----------------------------- parameters --------------------------------------
def init_params(key):
    keys = iter(jax.random.split(key, 64))

    def nrm(shape, s=0.05):
        return s * jax.random.normal(next(keys), shape, dtype=jnp.float32)

    p = {}
    # gender_encoder: Linear(1, 32); gender_bn: BatchNorm1d(32), eval mode
    p["gender_w"] = nrm((1, GENDER_DIM))
    p["gender_b"] = nrm((GENDER_DIM,))
    p["bn_w"] = 1.0 + nrm((GENDER_DIM,))
    p["bn_b"] = nrm((GENDER_DIM,))
    p["bn_mean"] = jnp.zeros((GENDER_DIM,), jnp.float32)
    p["bn_var"] = jnp.ones((GENDER_DIM,), jnp.float32)

    # TODO(synk): backbone0-3, attn0, attn1 and backbone.fc come from an external
    # pretrained backbone not included in the provided source; deterministic
    # shape-preserving stand-ins (avg-pool + 1x1 conv + ReLU, sigmoid spatial
    # attention, small fc head) replace them.  Weights are (Cin, Cout) for NHWC.
    p["bb0_w"] = nrm((3, C_BB0))
    p["bb1_w"] = nrm((C_BB0, C_V0))
    p["bb2_w"] = nrm((C_V0, C_V1))
    p["bb3_w"] = nrm((C_V1, C_BB3))

    def vit_params(cin, d):
        # q/k/v Linear(cin + 32, d): token halves fused into one (cin, 3d)
        # weight; gender halves stacked (3, 32, d) and applied in the wrapper.
        return {
            "wqkv_x": nrm((cin, 3 * d)),
            "wg_qkv": nrm((3, GENDER_DIM, d)),
            "ln_w": jnp.ones((d,), jnp.float32),
            "ln_b": jnp.zeros((d,), jnp.float32),
            "wfc2": nrm((d, cin)),
        }

    p["vit0"] = vit_params(C_V0, ATTN_DIM)
    p["vit1"] = vit_params(C_V1, ATTN_DIM)

    p["fc_w"] = nrm((C_BB3 + GENDER_DIM, FC_OUT))
    p["fc_b"] = nrm((FC_OUT,))
    return p


# ----------------------------- full forward ------------------------------------
def model_forward(params, image, gender):
    gender_encode = gender_branch(params, gender)

    # One NCHW->NHWC transpose at entry; everything downstream is channel-last.
    x = jnp.transpose(image, (0, 2, 3, 1))

    # frozen backbone0/attn0, backbone1/attn1 (stand-ins)
    x0, attn0 = spatial_attn_stub(
        jnp.maximum(conv1x1(avgpool2(x), params["bb0_w"]), 0.0))
    x1, attn1 = spatial_attn_stub(
        jnp.maximum(conv1x1(avgpool2(x0), params["bb1_w"]), 0.0))

    # vit_block0 on x1, then x1 scaled by the (nearest-interpolated) attention map.
    cls_token0, t0_attn1, t0_attn2 = vit_block_forward(x1, gender_encode, params["vit0"])
    # F.interpolate(mode='nearest') to x1's size is the identity here because the
    # attention map is produced at x1's own spatial resolution.
    b1, h1, w1, _ = x1.shape
    x1 = x1 * t0_attn2.reshape(b1, h1, w1, 1)

    x2 = jnp.maximum(conv1x1(avgpool2(x1), params["bb2_w"]), 0.0)      # backbone2 stand-in
    cls_token1, t1_attn1, t1_attn2 = vit_block_forward(x2, gender_encode, params["vit1"])
    b2, h2, w2, _ = x2.shape
    x2 = x2 * t1_attn2.reshape(b2, h2, w2, 1)

    x3 = jnp.maximum(conv1x1(avgpool2(x2), params["bb3_w"]), 0.0)      # backbone3 stand-in

    feat = jnp.mean(x3, axis=(1, 2))                    # adaptive_avg_pool2d(1) + flatten
    feat = jnp.concatenate([feat, gender_encode], axis=1)
    out = jnp.dot(feat, params["fc_w"]) + params["fc_b"]   # tiny fc head: plain XLA

    attn0 = jnp.transpose(attn0, (0, 3, 1, 2))          # back to NCHW for outputs
    attn1 = jnp.transpose(attn1, (0, 3, 1, 2))
    return (out, cls_token0, t0_attn1, t0_attn2,
            cls_token1, t1_attn1, t1_attn2, attn0, attn1)


# ----------------------------- main --------------------------------------------
if __name__ == "__main__":
    key = jax.random.PRNGKey(0)
    pkey, ikey, gkey = jax.random.split(key, 3)
    params = init_params(pkey)

    image = jax.random.normal(ikey, (B, 3, 32, 32), dtype=jnp.float32)
    gender = jax.random.bernoulli(gkey, 0.5, (B, 1)).astype(jnp.float32)

    fwd = jax.jit(model_forward)
    outs = jax.block_until_ready(fwd(params, image, gender))

    (x, cls0, t0a1, t0a2, cls1, t1a1, t1a2, attn0, attn1) = outs
    assert x.shape == (B, FC_OUT)
    assert cls0.shape == (B, C_V0) and cls1.shape == (B, C_V1)
    assert t0a1.shape == (B, 1, 8, 8) and t0a2.shape == (B, 1, 8, 8)
    assert t1a1.shape == (B, 1, 4, 4) and t1a2.shape == (B, 1, 4, 4)
    assert attn0.shape == (B, 1, 16, 16) and attn1.shape == (B, 1, 8, 8)
    for o in outs:
        assert bool(jnp.all(jnp.isfinite(o)))
    print("KERNEL_OK")
</pallas_src>

<mosaic_0001>
module attributes {stable_mosaic.version = 11 : i64} {
  func.func @_vit_attn_kernel(%arg0: i32, %arg1: memref<1x64x16xbf16, #tpu.memory_space<vmem>>, %arg2: memref<1x1x16xbf16, #tpu.memory_space<vmem>>, %arg3: memref<1x3x128xf32, #tpu.memory_space<vmem>>, %arg4: memref<16x384xbf16, #tpu.memory_space<vmem>>, %arg5: memref<1x128xf32, #tpu.memory_space<vmem>>, %arg6: memref<1x128xf32, #tpu.memory_space<vmem>>, %arg7: memref<128x16xbf16, #tpu.memory_space<vmem>>, %arg8: memref<1x1x16xf32, #tpu.memory_space<vmem>>, %arg9: memref<1x1x64xf32, #tpu.memory_space<vmem>>) attributes {dimension_semantics = [#tpu.dimension_semantics<parallel>], iteration_bounds = array<i64: 2>, scalar_prefetch = 0 : i64, scratch_operands = 0 : i64, tpu.core_type = #tpu.core_type<tc>, window_params = [{transform_indices = @transform_0, window_bounds = array<i64: 1, 64, 16>}, {transform_indices = @transform_1, window_bounds = array<i64: 1, 1, 16>}, {transform_indices = @transform_2, window_bounds = array<i64: 1, 3, 128>}, {pipeline_mode = #tpu.pipeline_mode<synchronous>, transform_indices = @transform_3, window_bounds = array<i64: 16, 384>}, {pipeline_mode = #tpu.pipeline_mode<synchronous>, transform_indices = @transform_4, window_bounds = array<i64: 1, 128>}, {pipeline_mode = #tpu.pipeline_mode<synchronous>, transform_indices = @transform_5, window_bounds = array<i64: 1, 128>}, {pipeline_mode = #tpu.pipeline_mode<synchronous>, transform_indices = @transform_6, window_bounds = array<i64: 128, 16>}, {transform_indices = @transform_7, window_bounds = array<i64: 1, 1, 16>}, {transform_indices = @transform_8, window_bounds = array<i64: 1, 1, 64>}]} {
    %c0 = arith.constant 0 : index
    %c0_0 = arith.constant 0 : index
    %c0_1 = arith.constant 0 : index
    %0 = vector.load %arg1[%c0, %c0_0, %c0_1] : memref<1x64x16xbf16, #tpu.memory_space<vmem>>, vector<1x64x16xbf16>
    %1 = vector.shape_cast %0 : vector<1x64x16xbf16> to vector<64x16xbf16>
    %c0_2 = arith.constant 0 : index
    %c0_3 = arith.constant 0 : index
    %c0_4 = arith.constant 0 : index
    %2 = vector.load %arg2[%c0_2, %c0_3, %c0_4] : memref<1x1x16xbf16, #tpu.memory_space<vmem>>, vector<1x1x16xbf16>
    %3 = vector.shape_cast %2 : vector<1x1x16xbf16> to vector<1x16xbf16>
    %c0_5 = arith.constant 0 : index
    %c0_6 = arith.constant 0 : index
    %c0_7 = arith.constant 0 : index
    %4 = vector.load %arg3[%c0_5, %c0_6, %c0_7] : memref<1x3x128xf32, #tpu.memory_space<vmem>>, vector<1x3x128xf32>
    %5 = vector.shape_cast %4 : vector<1x3x128xf32> to vector<3x128xf32>
    %6 = vector.extract_strided_slice %5 {offsets = [0, 0], sizes = [1, 128], strides = [1, 1]} : vector<3x128xf32> to vector<1x128xf32>
    %7 = vector.extract_strided_slice %5 {offsets = [1, 0], sizes = [1, 128], strides = [1, 1]} : vector<3x128xf32> to vector<1x128xf32>
    %8 = vector.extract_strided_slice %5 {offsets = [2, 0], sizes = [1, 128], strides = [1, 1]} : vector<3x128xf32> to vector<1x128xf32>
    %c0_8 = arith.constant 0 : index
    %c0_9 = arith.constant 0 : index
    %9 = vector.load %arg5[%c0_8, %c0_9] : memref<1x128xf32, #tpu.memory_space<vmem>>, vector<1x128xf32>
    %c0_10 = arith.constant 0 : index
    %c0_11 = arith.constant 0 : index
    %10 = vector.load %arg6[%c0_10, %c0_11] : memref<1x128xf32, #tpu.memory_space<vmem>>, vector<1x128xf32>
    %c0_12 = arith.constant 0 : index
    %c0_13 = arith.constant 0 : index
    %11 = vector.load %arg4[%c0_12, %c0_13] : memref<16x384xbf16, #tpu.memory_space<vmem>>, vector<16x384xbf16>
    %12 = vector.extract_strided_slice %11 {offsets = [0, 128], sizes = [16, 256], strides = [1, 1]} : vector<16x384xbf16> to vector<16x256xbf16>
    %cst = arith.constant dense<0.000000e+00> : vector<1x384xf32>
    %13 = tpu.matmul %3, %11, %cst {dimension_numbers = #tpu.dot_dimension_numbers<[1], [0], [0], [1], [0, 0, 1, 1], [], []>} : vector<1x16xbf16>, vector<16x384xbf16>, vector<1x384xf32> -> vector<1x384xf32>
    %14 = vector.extract_strided_slice %13 {offsets = [0, 0], sizes = [1, 128], strides = [1, 1]} : vector<1x384xf32> to vector<1x128xf32>
    %15 = arith.addf %14, %6 : vector<1x128xf32>
    %cst_14 = arith.constant 0.000000e+00 : f32
    %16 = vector.broadcast %cst_14 : f32 to vector<1x128xf32>
    %17 = arith.maximumf %15, %16 : vector<1x128xf32>
    %cst_15 = arith.constant dense<0.000000e+00> : vector<1xf32>
    %18 = vector.multi_reduction <add>, %17, %cst_15 [1] : vector<1x128xf32> to vector<1xf32>
    %19 = vector.shape_cast %18 : vector<1xf32> to vector<1x1xf32>
    %cst_16 = arith.constant 1.280000e+02 : f32
    %20 = vector.broadcast %cst_16 : f32 to vector<1x1xf32>
    %21 = arith.divf %19, %20 : vector<1x1xf32>
    %22 = vector.broadcast %21 : vector<1x1xf32> to vector<1x128xf32>
    %23 = arith.subf %17, %22 : vector<1x128xf32>
    %24 = arith.mulf %23, %23 : vector<1x128xf32>
    %cst_17 = arith.constant dense<0.000000e+00> : vector<1xf32>
    %25 = vector.multi_reduction <add>, %24, %cst_17 [1] : vector<1x128xf32> to vector<1xf32>
    %26 = vector.shape_cast %25 : vector<1xf32> to vector<1x1xf32>
    %cst_18 = arith.constant 1.280000e+02 : f32
    %27 = vector.broadcast %cst_18 : f32 to vector<1x1xf32>
    %28 = arith.divf %26, %27 : vector<1x1xf32>
    %29 = vector.broadcast %21 : vector<1x1xf32> to vector<1x128xf32>
    %30 = arith.subf %17, %29 : vector<1x128xf32>
    %cst_19 = arith.constant 9.99999974E-6 : f32
    %31 = vector.broadcast %cst_19 : f32 to vector<1x1xf32>
    %32 = arith.addf %28, %31 : vector<1x1xf32>
    %33 = math.rsqrt %32 : vector<1x1xf32>
    %34 = vector.broadcast %33 : vector<1x1xf32> to vector<1x128xf32>
    %35 = arith.mulf %30, %34 : vector<1x128xf32>
    %36 = arith.mulf %35, %9 : vector<1x128xf32>
    %37 = arith.addf %36, %10 : vector<1x128xf32>
    %cst_20 = arith.constant 0.0883883461 : f32
    %38 = vector.broadcast %cst_20 : f32 to vector<1x128xf32>
    %39 = arith.mulf %37, %38 : vector<1x128xf32>
    %40 = vector.extract_strided_slice %13 {offsets = [0, 128], sizes = [1, 128], strides = [1, 1]} : vector<1x384xf32> to vector<1x128xf32>
    %41 = arith.addf %40, %7 : vector<1x128xf32>
    %cst_21 = arith.constant 0.000000e+00 : f32
    %42 = vector.broadcast %cst_21 : f32 to vector<1x128xf32>
    %43 = arith.maximumf %41, %42 : vector<1x128xf32>
    %cst_22 = arith.constant dense<0.000000e+00> : vector<1xf32>
    %44 = vector.multi_reduction <add>, %43, %cst_22 [1] : vector<1x128xf32> to vector<1xf32>
    %45 = vector.shape_cast %44 : vector<1xf32> to vector<1x1xf32>
    %cst_23 = arith.constant 1.280000e+02 : f32
    %46 = vector.broadcast %cst_23 : f32 to vector<1x1xf32>
    %47 = arith.divf %45, %46 : vector<1x1xf32>
    %48 = vector.broadcast %47 : vector<1x1xf32> to vector<1x128xf32>
    %49 = arith.subf %43, %48 : vector<1x128xf32>
    %50 = arith.mulf %49, %49 : vector<1x128xf32>
    %cst_24 = arith.constant dense<0.000000e+00> : vector<1xf32>
    %51 = vector.multi_reduction <add>, %50, %cst_24 [1] : vector<1x128xf32> to vector<1xf32>
    %52 = vector.shape_cast %51 : vector<1xf32> to vector<1x1xf32>
    %cst_25 = arith.constant 1.280000e+02 : f32
    %53 = vector.broadcast %cst_25 : f32 to vector<1x1xf32>
    %54 = arith.divf %52, %53 : vector<1x1xf32>
    %55 = vector.broadcast %47 : vector<1x1xf32> to vector<1x128xf32>
    %56 = arith.subf %43, %55 : vector<1x128xf32>
    %cst_26 = arith.constant 9.99999974E-6 : f32
    %57 = vector.broadcast %cst_26 : f32 to vector<1x1xf32>
    %58 = arith.addf %54, %57 : vector<1x1xf32>
    %59 = math.rsqrt %58 : vector<1x1xf32>
    %60 = vector.broadcast %59 : vector<1x1xf32> to vector<1x128xf32>
    %61 = arith.mulf %56, %60 : vector<1x128xf32>
    %62 = arith.mulf %61, %9 : vector<1x128xf32>
    %63 = arith.addf %62, %10 : vector<1x128xf32>
    %64 = vector.extract_strided_slice %13 {offsets = [0, 256], sizes = [1, 128], strides = [1, 1]} : vector<1x384xf32> to vector<1x128xf32>
    %65 = arith.addf %64, %8 : vector<1x128xf32>
    %cst_27 = arith.constant 0.000000e+00 : f32
    %66 = vector.broadcast %cst_27 : f32 to vector<1x128xf32>
    %67 = arith.maximumf %65, %66 : vector<1x128xf32>
    %cst_28 = arith.constant dense<0.000000e+00> : vector<1xf32>
    %68 = vector.multi_reduction <add>, %67, %cst_28 [1] : vector<1x128xf32> to vector<1xf32>
    %69 = vector.shape_cast %68 : vector<1xf32> to vector<1x1xf32>
    %cst_29 = arith.constant 1.280000e+02 : f32
    %70 = vector.broadcast %cst_29 : f32 to vector<1x1xf32>
    %71 = arith.divf %69, %70 : vector<1x1xf32>
    %72 = vector.broadcast %71 : vector<1x1xf32> to vector<1x128xf32>
    %73 = arith.subf %67, %72 : vector<1x128xf32>
    %74 = arith.mulf %73, %73 : vector<1x128xf32>
    %cst_30 = arith.constant dense<0.000000e+00> : vector<1xf32>
    %75 = vector.multi_reduction <add>, %74, %cst_30 [1] : vector<1x128xf32> to vector<1xf32>
    %76 = vector.shape_cast %75 : vector<1xf32> to vector<1x1xf32>
    %cst_31 = arith.constant 1.280000e+02 : f32
    %77 = vector.broadcast %cst_31 : f32 to vector<1x1xf32>
    %78 = arith.divf %76, %77 : vector<1x1xf32>
    %79 = vector.broadcast %71 : vector<1x1xf32> to vector<1x128xf32>
    %80 = arith.subf %67, %79 : vector<1x128xf32>
    %cst_32 = arith.constant 9.99999974E-6 : f32
    %81 = vector.broadcast %cst_32 : f32 to vector<1x1xf32>
    %82 = arith.addf %78, %81 : vector<1x1xf32>
    %83 = math.rsqrt %82 : vector<1x1xf32>
    %84 = vector.broadcast %83 : vector<1x1xf32> to vector<1x128xf32>
    %85 = arith.mulf %80, %84 : vector<1x128xf32>
    %86 = arith.mulf %85, %9 : vector<1x128xf32>
    %87 = arith.addf %86, %10 : vector<1x128xf32>
    %cst_33 = arith.constant dense<0.000000e+00> : vector<64x256xf32>
    %88 = tpu.matmul %1, %12, %cst_33 {dimension_numbers = #tpu.dot_dimension_numbers<[1], [0], [0], [1], [0, 0, 1, 1], [], []>} : vector<64x16xbf16>, vector<16x256xbf16>, vector<64x256xf32> -> vector<64x256xf32>
    %89 = vector.extract_strided_slice %88 {offsets = [0, 0], sizes = [64, 128], strides = [1, 1]} : vector<64x256xf32> to vector<64x128xf32>
    %90 = vector.broadcast %7 : vector<1x128xf32> to vector<64x128xf32>
    %91 = arith.addf %89, %90 : vector<64x128xf32>
    %cst_34 = arith.constant 0.000000e+00 : f32
    %92 = vector.broadcast %cst_34 : f32 to vector<64x128xf32>
    %93 = arith.maximumf %91, %92 : vector<64x128xf32>
    %cst_35 = arith.constant dense<0.000000e+00> : vector<64xf32>
    %94 = vector.multi_reduction <add>, %93, %cst_35 [1] : vector<64x128xf32> to vector<64xf32>
    %95 = vector.shape_cast %94 : vector<64xf32> to vector<64x1xf32>
    %cst_36 = arith.constant 1.280000e+02 : f32
    %96 = vector.broadcast %cst_36 : f32 to vector<64x1xf32>
    %97 = arith.divf %95, %96 : vector<64x1xf32>
    %98 = vector.broadcast %97 : vector<64x1xf32> to vector<64x128xf32>
    %99 = arith.subf %93, %98 : vector<64x128xf32>
    %100 = arith.mulf %99, %99 : vector<64x128xf32>
    %cst_37 = arith.constant dense<0.000000e+00> : vector<64xf32>
    %101 = vector.multi_reduction <add>, %100, %cst_37 [1] : vector<64x128xf32> to vector<64xf32>
    %102 = vector.shape_cast %101 : vector<64xf32> to vector<64x1xf32>
    %cst_38 = arith.constant 1.280000e+02 : f32
    %103 = vector.broadcast %cst_38 : f32 to vector<64x1xf32>
    %104 = arith.divf %102, %103 : vector<64x1xf32>
    %105 = vector.broadcast %97 : vector<64x1xf32> to vector<64x128xf32>
    %106 = arith.subf %93, %105 : vector<64x128xf32>
    %cst_39 = arith.constant 9.99999974E-6 : f32
    %107 = vector.broadcast %cst_39 : f32 to vector<64x1xf32>
    %108 = arith.addf %104, %107 : vector<64x1xf32>
    %109 = math.rsqrt %108 : vector<64x1xf32>
    %110 = vector.broadcast %109 : vector<64x1xf32> to vector<64x128xf32>
    %111 = arith.mulf %106, %110 : vector<64x128xf32>
    %112 = vector.broadcast %9 : vector<1x128xf32> to vector<64x128xf32>
    %113 = arith.mulf %111, %112 : vector<64x128xf32>
    %114 = vector.broadcast %10 : vector<1x128xf32> to vector<64x128xf32>
    %115 = arith.addf %113, %114 : vector<64x128xf32>
    %116 = arith.truncf %115 : vector<64x128xf32> to vector<64x128xbf16>
    %117 = vector.extract_strided_slice %88 {offsets = [0, 128], sizes = [64, 128], strides = [1, 1]} : vector<64x256xf32> to vector<64x128xf32>
    %118 = vector.broadcast %8 : vector<1x128xf32> to vector<64x128xf32>
    %119 = arith.addf %117, %118 : vector<64x128xf32>
    %cst_40 = arith.constant 0.000000e+00 : f32
    %120 = vector.broadcast %cst_40 : f32 to vector<64x128xf32>
    %121 = arith.maximumf %119, %120 : vector<64x128xf32>
    %cst_41 = arith.constant dense<0.000000e+00> : vector<64xf32>
    %122 = vector.multi_reduction <add>, %121, %cst_41 [1] : vector<64x128xf32> to vector<64xf32>
    %123 = vector.shape_cast %122 : vector<64xf32> to vector<64x1xf32>
    %cst_42 = arith.constant 1.280000e+02 : f32
    %124 = vector.broadcast %cst_42 : f32 to vector<64x1xf32>
    %125 = arith.divf %123, %124 : vector<64x1xf32>
    %126 = vector.broadcast %125 : vector<64x1xf32> to vector<64x128xf32>
    %127 = arith.subf %121, %126 : vector<64x128xf32>
    %128 = arith.mulf %127, %127 : vector<64x128xf32>
    %cst_43 = arith.constant dense<0.000000e+00> : vector<64xf32>
    %129 = vector.multi_reduction <add>, %128, %cst_43 [1] : vector<64x128xf32> to vector<64xf32>
    %130 = vector.shape_cast %129 : vector<64xf32> to vector<64x1xf32>
    %cst_44 = arith.constant 1.280000e+02 : f32
    %131 = vector.broadcast %cst_44 : f32 to vector<64x1xf32>
    %132 = arith.divf %130, %131 : vector<64x1xf32>
    %133 = vector.broadcast %125 : vector<64x1xf32> to vector<64x128xf32>
    %134 = arith.subf %121, %133 : vector<64x128xf32>
    %cst_45 = arith.constant 9.99999974E-6 : f32
    %135 = vector.broadcast %cst_45 : f32 to vector<64x1xf32>
    %136 = arith.addf %132, %135 : vector<64x1xf32>
    %137 = math.rsqrt %136 : vector<64x1xf32>
    %138 = vector.broadcast %137 : vector<64x1xf32> to vector<64x128xf32>
    %139 = arith.mulf %134, %138 : vector<64x128xf32>
    %140 = vector.broadcast %9 : vector<1x128xf32> to vector<64x128xf32>
    %141 = arith.mulf %139, %140 : vector<64x128xf32>
    %142 = vector.broadcast %10 : vector<1x128xf32> to vector<64x128xf32>
    %143 = arith.addf %141, %142 : vector<64x128xf32>
    %144 = arith.truncf %143 : vector<64x128xf32> to vector<64x128xbf16>
    %145 = arith.truncf %39 : vector<1x128xf32> to vector<1x128xbf16>
    %cst_46 = arith.constant dense<0.000000e+00> : vector<1x64xf32>
    %146 = tpu.matmul %145, %116, %cst_46 {dimension_numbers = #tpu.dot_dimension_numbers<[1], [1], [0], [0], [0, 0, 1, 0], [], []>} : vector<1x128xbf16>, vector<64x128xbf16>, vector<1x64xf32> -> vector<1x64xf32>
    %147 = arith.mulf %39, %63 : vector<1x128xf32>
    %cst_47 = arith.constant dense<0.000000e+00> : vector<1xf32>
    %148 = vector.multi_reduction <add>, %147, %cst_47 [1] : vector<1x128xf32> to vector<1xf32>
    %149 = vector.shape_cast %148 : vector<1xf32> to vector<1x1xf32>
    %cst_48 = arith.constant dense<0xFF800000> : vector<1xf32>
    %150 = vector.multi_reduction <maximumf>, %146, %cst_48 [1] : vector<1x64xf32> to vector<1xf32>
    %151 = vector.shape_cast %150 : vector<1xf32> to vector<1x1xf32>
    %152 = arith.maximumf %151, %149 : vector<1x1xf32>
    %153 = vector.broadcast %152 : vector<1x1xf32> to vector<1x64xf32>
    %154 = arith.subf %146, %153 : vector<1x64xf32>
    %155 = math.exp %154 : vector<1x64xf32>
    %156 = arith.subf %149, %152 : vector<1x1xf32>
    %157 = math.exp %156 : vector<1x1xf32>
    %cst_49 = arith.constant dense<0.000000e+00> : vector<1xf32>
    %158 = vector.multi_reduction <add>, %155, %cst_49 [1] : vector<1x64xf32> to vector<1xf32>
    %159 = vector.shape_cast %158 : vector<1xf32> to vector<1x1xf32>
    %160 = arith.addf %157, %159 : vector<1x1xf32>
    %cst_50 = arith.constant 1.000000e+00 : f32
    %161 = vector.broadcast %cst_50 : f32 to vector<1x1xf32>
    %162 = arith.divf %161, %160 : vector<1x1xf32>
    %163 = vector.broadcast %162 : vector<1x1xf32> to vector<1x64xf32>
    %164 = arith.mulf %155, %163 : vector<1x64xf32>
    %165 = arith.mulf %157, %162 : vector<1x1xf32>
    %166 = vector.broadcast %165 : vector<1x1xf32> to vector<1x128xf32>
    %167 = arith.mulf %166, %87 : vector<1x128xf32>
    %168 = arith.truncf %164 : vector<1x64xf32> to vector<1x64xbf16>
    %cst_51 = arith.constant dense<0.000000e+00> : vector<1x128xf32>
    %169 = tpu.matmul %168, %144, %cst_51 {dimension_numbers = #tpu.dot_dimension_numbers<[1], [0], [0], [1], [0, 0, 1, 1], [], []>} : vector<1x64xbf16>, vector<64x128xbf16>, vector<1x128xf32> -> vector<1x128xf32>
    %170 = arith.addf %167, %169 : vector<1x128xf32>
    %171 = arith.truncf %170 : vector<1x128xf32> to vector<1x128xbf16>
    %c0_52 = arith.constant 0 : index
    %c0_53 = arith.constant 0 : index
    %172 = vector.load %arg7[%c0_52, %c0_53] : memref<128x16xbf16, #tpu.memory_space<vmem>>, vector<128x16xbf16>
    %cst_54 = arith.constant dense<0.000000e+00> : vector<1x16xf32>
    %173 = tpu.matmul %171, %172, %cst_54 {dimension_numbers = #tpu.dot_dimension_numbers<[1], [0], [0], [1], [0, 0, 1, 1], [], []>} : vector<1x128xbf16>, vector<128x16xbf16>, vector<1x16xf32> -> vector<1x16xf32>
    %c0_55 = arith.constant 0 : index
    %c0_56 = arith.constant 0 : index
    %c0_57 = arith.constant 0 : index
    %174 = vector.load %arg8[%c0_55, %c0_56, %c0_57] : memref<1x1x16xf32, #tpu.memory_space<vmem>>, vector<1x1x16xf32>
    %175 = vector.shape_cast %174 : vector<1x1x16xf32> to vector<1x16xf32>
    %176 = vector.shape_cast %173 : vector<1x16xf32> to vector<1x1x16xf32>
    tpu.vector_store %arg8[%c0_55, %c0_56, %c0_57], %176 {strides = array<i32>} : memref<1x1x16xf32, #tpu.memory_space<vmem>>, vector<1x1x16xf32>,
    %c0_58 = arith.constant 0 : index
    %c0_59 = arith.constant 0 : index
    %c0_60 = arith.constant 0 : index
    %177 = vector.load %arg9[%c0_58, %c0_59, %c0_60] : memref<1x1x64xf32, #tpu.memory_space<vmem>>, vector<1x1x64xf32>
    %178 = vector.shape_cast %177 : vector<1x1x64xf32> to vector<1x64xf32>
    %179 = vector.shape_cast %164 : vector<1x64xf32> to vector<1x1x64xf32>
    tpu.vector_store %arg9[%c0_58, %c0_59, %c0_60], %179 {strides = array<i32>} : memref<1x1x64xf32, #tpu.memory_space<vmem>>, vector<1x1x64xf32>,
    return
  }
  func.func @transform_0(%arg0: i32) -> (i32, i32, i32) {
    %c0_i32 = arith.constant 0 : i32
    %c0_i32_0 = arith.constant 0 : i32
    %c0_i32_1 = arith.constant 0 : i32
    return %arg0, %c0_i32, %c0_i32_0 : i32, i32, i32
  }
  func.func @transform_1(%arg0: i32) -> (i32, i32, i32) {
    %c0_i32 = arith.constant 0 : i32
    %c0_i32_0 = arith.constant 0 : i32
    %c0_i32_1 = arith.constant 0 : i32
    return %arg0, %c0_i32, %c0_i32_0 : i32, i32, i32
  }
  func.func @transform_2(%arg0: i32) -> (i32, i32, i32) {
    %c0_i32 = arith.constant 0 : i32
    %c0_i32_0 = arith.constant 0 : i32
    %c0_i32_1 = arith.constant 0 : i32
    return %arg0, %c0_i32, %c0_i32_0 : i32, i32, i32
  }
  func.func @transform_3(%arg0: i32) -> (i32, i32) {
    %c0_i32 = arith.constant 0 : i32
    %c0_i32_0 = arith.constant 0 : i32
    %c0_i32_1 = arith.constant 0 : i32
    return %c0_i32, %c0_i32_0 : i32, i32
  }
  func.func @transform_4(%arg0: i32) -> (i32, i32) {
    %c0_i32 = arith.constant 0 : i32
    %c0_i32_0 = arith.constant 0 : i32
    %c0_i32_1 = arith.constant 0 : i32
    return %c0_i32, %c0_i32_0 : i32, i32
  }
  func.func @transform_5(%arg0: i32) -> (i32, i32) {
    %c0_i32 = arith.constant 0 : i32
    %c0_i32_0 = arith.constant 0 : i32
    %c0_i32_1 = arith.constant 0 : i32
    return %c0_i32, %c0_i32_0 : i32, i32
  }
  func.func @transform_6(%arg0: i32) -> (i32, i32) {
    %c0_i32 = arith.constant 0 : i32
    %c0_i32_0 = arith.constant 0 : i32
    %c0_i32_1 = arith.constant 0 : i32
    return %c0_i32, %c0_i32_0 : i32, i32
  }
  func.func @transform_7(%arg0: i32) -> (i32, i32, i32) {
    %c0_i32 = arith.constant 0 : i32
    %c0_i32_0 = arith.constant 0 : i32
    %c0_i32_1 = arith.constant 0 : i32
    return %arg0, %c0_i32, %c0_i32_0 : i32, i32, i32
  }
  func.func @transform_8(%arg0: i32) -> (i32, i32, i32) {
    %c0_i32 = arith.constant 0 : i32
    %c0_i32_0 = arith.constant 0 : i32
    %c0_i32_1 = arith.constant 0 : i32
    return %arg0, %c0_i32, %c0_i32_0 : i32, i32, i32
  }
}

module attributes {stable_mosaic.version = 11 : i64} {
  func.func @_vit_attn_kernel(%arg0: i32, %arg1: memref<1x16x32xbf16, #tpu.memory_space<vmem>>, %arg2: memref<1x1x32xbf16, #tpu.memory_space<vmem>>, %arg3: memref<1x3x128xf32, #tpu.memory_space<vmem>>, %arg4: memref<32x384xbf16, #tpu.memory_space<vmem>>, %arg5: memref<1x128xf32, #tpu.memory_space<vmem>>, %arg6: memref<1x128xf32, #tpu.memory_space<vmem>>, %arg7: memref<128x32xbf16, #tpu.memory_space<vmem>>, %arg8: memref<1x1x32xf32, #tpu.memory_space<vmem>>, %arg9: memref<1x1x16xf32, #tpu.memory_space<vmem>>) attributes {dimension_semantics = [#tpu.dimension_semantics<parallel>], iteration_bounds = array<i64: 2>, scalar_prefetch = 0 : i64, scratch_operands = 0 : i64, tpu.core_type = #tpu.core_type<tc>, window_params = [{transform_indices = @transform_0, window_bounds = array<i64: 1, 16, 32>}, {transform_indices = @transform_1, window_bounds = array<i64: 1, 1, 32>}, {transform_indices = @transform_2, window_bounds = array<i64: 1, 3, 128>}, {pipeline_mode = #tpu.pipeline_mode<synchronous>, transform_indices = @transform_3, window_bounds = array<i64: 32, 384>}, {pipeline_mode = #tpu.pipeline_mode<synchronous>, transform_indices = @transform_4, window_bounds = array<i64: 1, 128>}, {pipeline_mode = #tpu.pipeline_mode<synchronous>, transform_indices = @transform_5, window_bounds = array<i64: 1, 128>}, {pipeline_mode = #tpu.pipeline_mode<synchronous>, transform_indices = @transform_6, window_bounds = array<i64: 128, 32>}, {transform_indices = @transform_7, window_bounds = array<i64: 1, 1, 32>}, {transform_indices = @transform_8, window_bounds = array<i64: 1, 1, 16>}]} {
    %c0 = arith.constant 0 : index
    %c0_0 = arith.constant 0 : index
    %c0_1 = arith.constant 0 : index
    %0 = vector.load %arg1[%c0, %c0_0, %c0_1] : memref<1x16x32xbf16, #tpu.memory_space<vmem>>, vector<1x16x32xbf16>
    %1 = vector.shape_cast %0 : vector<1x16x32xbf16> to vector<16x32xbf16>
    %c0_2 = arith.constant 0 : index
    %c0_3 = arith.constant 0 : index
    %c0_4 = arith.constant 0 : index
    %2 = vector.load %arg2[%c0_2, %c0_3, %c0_4] : memref<1x1x32xbf16, #tpu.memory_space<vmem>>, vector<1x1x32xbf16>
    %3 = vector.shape_cast %2 : vector<1x1x32xbf16> to vector<1x32xbf16>
    %c0_5 = arith.constant 0 : index
    %c0_6 = arith.constant 0 : index
    %c0_7 = arith.constant 0 : index
    %4 = vector.load %arg3[%c0_5, %c0_6, %c0_7] : memref<1x3x128xf32, #tpu.memory_space<vmem>>, vector<1x3x128xf32>
    %5 = vector.shape_cast %4 : vector<1x3x128xf32> to vector<3x128xf32>
    %6 = vector.extract_strided_slice %5 {offsets = [0, 0], sizes = [1, 128], strides = [1, 1]} : vector<3x128xf32> to vector<1x128xf32>
    %7 = vector.extract_strided_slice %5 {offsets = [1, 0], sizes = [1, 128], strides = [1, 1]} : vector<3x128xf32> to vector<1x128xf32>
    %8 = vector.extract_strided_slice %5 {offsets = [2, 0], sizes = [1, 128], strides = [1, 1]} : vector<3x128xf32> to vector<1x128xf32>
    %c0_8 = arith.constant 0 : index
    %c0_9 = arith.constant 0 : index
    %9 = vector.load %arg5[%c0_8, %c0_9] : memref<1x128xf32, #tpu.memory_space<vmem>>, vector<1x128xf32>
    %c0_10 = arith.constant 0 : index
    %c0_11 = arith.constant 0 : index
    %10 = vector.load %arg6[%c0_10, %c0_11] : memref<1x128xf32, #tpu.memory_space<vmem>>, vector<1x128xf32>
    %c0_12 = arith.constant 0 : index
    %c0_13 = arith.constant 0 : index
    %11 = vector.load %arg4[%c0_12, %c0_13] : memref<32x384xbf16, #tpu.memory_space<vmem>>, vector<32x384xbf16>
    %12 = vector.extract_strided_slice %11 {offsets = [0, 128], sizes = [32, 256], strides = [1, 1]} : vector<32x384xbf16> to vector<32x256xbf16>
    %cst = arith.constant dense<0.000000e+00> : vector<1x384xf32>
    %13 = tpu.matmul %3, %11, %cst {dimension_numbers = #tpu.dot_dimension_numbers<[1], [0], [0], [1], [0, 0, 1, 1], [], []>} : vector<1x32xbf16>, vector<32x384xbf16>, vector<1x384xf32> -> vector<1x384xf32>
    %14 = vector.extract_strided_slice %13 {offsets = [0, 0], sizes = [1, 128], strides = [1, 1]} : vector<1x384xf32> to vector<1x128xf32>
    %15 = arith.addf %14, %6 : vector<1x128xf32>
    %cst_14 = arith.constant 0.000000e+00 : f32
    %16 = vector.broadcast %cst_14 : f32 to vector<1x128xf32>
    %17 = arith.maximumf %15, %16 : vector<1x128xf32>
    %cst_15 = arith.constant dense<0.000000e+00> : vector<1xf32>
    %18 = vector.multi_reduction <add>, %17, %cst_15 [1] : vector<1x128xf32> to vector<1xf32>
    %19 = vector.shape_cast %18 : vector<1xf32> to vector<1x1xf32>
    %cst_16 = arith.constant 1.280000e+02 : f32
    %20 = vector.broadcast %cst_16 : f32 to vector<1x1xf32>
    %21 = arith.divf %19, %20 : vector<1x1xf32>
    %22 = vector.broadcast %21 : vector<1x1xf32> to vector<1x128xf32>
    %23 = arith.subf %17, %22 : vector<1x128xf32>
    %24 = arith.mulf %23, %23 : vector<1x128xf32>
    %cst_17 = arith.constant dense<0.000000e+00> : vector<1xf32>
    %25 = vector.multi_reduction <add>, %24, %cst_17 [1] : vector<1x128xf32> to vector<1xf32>
    %26 = vector.shape_cast %25 : vector<1xf32> to vector<1x1xf32>
    %cst_18 = arith.constant 1.280000e+02 : f32
    %27 = vector.broadcast %cst_18 : f32 to vector<1x1xf32>
    %28 = arith.divf %26, %27 : vector<1x1xf32>
    %29 = vector.broadcast %21 : vector<1x1xf32> to vector<1x128xf32>
    %30 = arith.subf %17, %29 : vector<1x128xf32>
    %cst_19 = arith.constant 9.99999974E-6 : f32
    %31 = vector.broadcast %cst_19 : f32 to vector<1x1xf32>
    %32 = arith.addf %28, %31 : vector<1x1xf32>
    %33 = math.rsqrt %32 : vector<1x1xf32>
    %34 = vector.broadcast %33 : vector<1x1xf32> to vector<1x128xf32>
    %35 = arith.mulf %30, %34 : vector<1x128xf32>
    %36 = arith.mulf %35, %9 : vector<1x128xf32>
    %37 = arith.addf %36, %10 : vector<1x128xf32>
    %cst_20 = arith.constant 0.0883883461 : f32
    %38 = vector.broadcast %cst_20 : f32 to vector<1x128xf32>
    %39 = arith.mulf %37, %38 : vector<1x128xf32>
    %40 = vector.extract_strided_slice %13 {offsets = [0, 128], sizes = [1, 128], strides = [1, 1]} : vector<1x384xf32> to vector<1x128xf32>
    %41 = arith.addf %40, %7 : vector<1x128xf32>
    %cst_21 = arith.constant 0.000000e+00 : f32
    %42 = vector.broadcast %cst_21 : f32 to vector<1x128xf32>
    %43 = arith.maximumf %41, %42 : vector<1x128xf32>
    %cst_22 = arith.constant dense<0.000000e+00> : vector<1xf32>
    %44 = vector.multi_reduction <add>, %43, %cst_22 [1] : vector<1x128xf32> to vector<1xf32>
    %45 = vector.shape_cast %44 : vector<1xf32> to vector<1x1xf32>
    %cst_23 = arith.constant 1.280000e+02 : f32
    %46 = vector.broadcast %cst_23 : f32 to vector<1x1xf32>
    %47 = arith.divf %45, %46 : vector<1x1xf32>
    %48 = vector.broadcast %47 : vector<1x1xf32> to vector<1x128xf32>
    %49 = arith.subf %43, %48 : vector<1x128xf32>
    %50 = arith.mulf %49, %49 : vector<1x128xf32>
    %cst_24 = arith.constant dense<0.000000e+00> : vector<1xf32>
    %51 = vector.multi_reduction <add>, %50, %cst_24 [1] : vector<1x128xf32> to vector<1xf32>
    %52 = vector.shape_cast %51 : vector<1xf32> to vector<1x1xf32>
    %cst_25 = arith.constant 1.280000e+02 : f32
    %53 = vector.broadcast %cst_25 : f32 to vector<1x1xf32>
    %54 = arith.divf %52, %53 : vector<1x1xf32>
    %55 = vector.broadcast %47 : vector<1x1xf32> to vector<1x128xf32>
    %56 = arith.subf %43, %55 : vector<1x128xf32>
    %cst_26 = arith.constant 9.99999974E-6 : f32
    %57 = vector.broadcast %cst_26 : f32 to vector<1x1xf32>
    %58 = arith.addf %54, %57 : vector<1x1xf32>
    %59 = math.rsqrt %58 : vector<1x1xf32>
    %60 = vector.broadcast %59 : vector<1x1xf32> to vector<1x128xf32>
    %61 = arith.mulf %56, %60 : vector<1x128xf32>
    %62 = arith.mulf %61, %9 : vector<1x128xf32>
    %63 = arith.addf %62, %10 : vector<1x128xf32>
    %64 = vector.extract_strided_slice %13 {offsets = [0, 256], sizes = [1, 128], strides = [1, 1]} : vector<1x384xf32> to vector<1x128xf32>
    %65 = arith.addf %64, %8 : vector<1x128xf32>
    %cst_27 = arith.constant 0.000000e+00 : f32
    %66 = vector.broadcast %cst_27 : f32 to vector<1x128xf32>
    %67 = arith.maximumf %65, %66 : vector<1x128xf32>
    %cst_28 = arith.constant dense<0.000000e+00> : vector<1xf32>
    %68 = vector.multi_reduction <add>, %67, %cst_28 [1] : vector<1x128xf32> to vector<1xf32>
    %69 = vector.shape_cast %68 : vector<1xf32> to vector<1x1xf32>
    %cst_29 = arith.constant 1.280000e+02 : f32
    %70 = vector.broadcast %cst_29 : f32 to vector<1x1xf32>
    %71 = arith.divf %69, %70 : vector<1x1xf32>
    %72 = vector.broadcast %71 : vector<1x1xf32> to vector<1x128xf32>
    %73 = arith.subf %67, %72 : vector<1x128xf32>
    %74 = arith.mulf %73, %73 : vector<1x128xf32>
    %cst_30 = arith.constant dense<0.000000e+00> : vector<1xf32>
    %75 = vector.multi_reduction <add>, %74, %cst_30 [1] : vector<1x128xf32> to vector<1xf32>
    %76 = vector.shape_cast %75 : vector<1xf32> to vector<1x1xf32>
    %cst_31 = arith.constant 1.280000e+02 : f32
    %77 = vector.broadcast %cst_31 : f32 to vector<1x1xf32>
    %78 = arith.divf %76, %77 : vector<1x1xf32>
    %79 = vector.broadcast %71 : vector<1x1xf32> to vector<1x128xf32>
    %80 = arith.subf %67, %79 : vector<1x128xf32>
    %cst_32 = arith.constant 9.99999974E-6 : f32
    %81 = vector.broadcast %cst_32 : f32 to vector<1x1xf32>
    %82 = arith.addf %78, %81 : vector<1x1xf32>
    %83 = math.rsqrt %82 : vector<1x1xf32>
    %84 = vector.broadcast %83 : vector<1x1xf32> to vector<1x128xf32>
    %85 = arith.mulf %80, %84 : vector<1x128xf32>
    %86 = arith.mulf %85, %9 : vector<1x128xf32>
    %87 = arith.addf %86, %10 : vector<1x128xf32>
    %cst_33 = arith.constant dense<0.000000e+00> : vector<16x256xf32>
    %88 = tpu.matmul %1, %12, %cst_33 {dimension_numbers = #tpu.dot_dimension_numbers<[1], [0], [0], [1], [0, 0, 1, 1], [], []>} : vector<16x32xbf16>, vector<32x256xbf16>, vector<16x256xf32> -> vector<16x256xf32>
    %89 = vector.extract_strided_slice %88 {offsets = [0, 0], sizes = [16, 128], strides = [1, 1]} : vector<16x256xf32> to vector<16x128xf32>
    %90 = vector.broadcast %7 : vector<1x128xf32> to vector<16x128xf32>
    %91 = arith.addf %89, %90 : vector<16x128xf32>
    %cst_34 = arith.constant 0.000000e+00 : f32
    %92 = vector.broadcast %cst_34 : f32 to vector<16x128xf32>
    %93 = arith.maximumf %91, %92 : vector<16x128xf32>
    %cst_35 = arith.constant dense<0.000000e+00> : vector<16xf32>
    %94 = vector.multi_reduction <add>, %93, %cst_35 [1] : vector<16x128xf32> to vector<16xf32>
    %95 = vector.shape_cast %94 : vector<16xf32> to vector<16x1xf32>
    %cst_36 = arith.constant 1.280000e+02 : f32
    %96 = vector.broadcast %cst_36 : f32 to vector<16x1xf32>
    %97 = arith.divf %95, %96 : vector<16x1xf32>
    %98 = vector.broadcast %97 : vector<16x1xf32> to vector<16x128xf32>
    %99 = arith.subf %93, %98 : vector<16x128xf32>
    %100 = arith.mulf %99, %99 : vector<16x128xf32>
    %cst_37 = arith.constant dense<0.000000e+00> : vector<16xf32>
    %101 = vector.multi_reduction <add>, %100, %cst_37 [1] : vector<16x128xf32> to vector<16xf32>
    %102 = vector.shape_cast %101 : vector<16xf32> to vector<16x1xf32>
    %cst_38 = arith.constant 1.280000e+02 : f32
    %103 = vector.broadcast %cst_38 : f32 to vector<16x1xf32>
    %104 = arith.divf %102, %103 : vector<16x1xf32>
    %105 = vector.broadcast %97 : vector<16x1xf32> to vector<16x128xf32>
    %106 = arith.subf %93, %105 : vector<16x128xf32>
    %cst_39 = arith.constant 9.99999974E-6 : f32
    %107 = vector.broadcast %cst_39 : f32 to vector<16x1xf32>
    %108 = arith.addf %104, %107 : vector<16x1xf32>
    %109 = math.rsqrt %108 : vector<16x1xf32>
    %110 = vector.broadcast %109 : vector<16x1xf32> to vector<16x128xf32>
    %111 = arith.mulf %106, %110 : vector<16x128xf32>
    %112 = vector.broadcast %9 : vector<1x128xf32> to vector<16x128xf32>
    %113 = arith.mulf %111, %112 : vector<16x128xf32>
    %114 = vector.broadcast %10 : vector<1x128xf32> to vector<16x128xf32>
    %115 = arith.addf %113, %114 : vector<16x128xf32>
    %116 = arith.truncf %115 : vector<16x128xf32> to vector<16x128xbf16>
    %117 = vector.extract_strided_slice %88 {offsets = [0, 128], sizes = [16, 128], strides = [1, 1]} : vector<16x256xf32> to vector<16x128xf32>
    %118 = vector.broadcast %8 : vector<1x128xf32> to vector<16x128xf32>
    %119 = arith.addf %117, %118 : vector<16x128xf32>
    %cst_40 = arith.constant 0.000000e+00 : f32
    %120 = vector.broadcast %cst_40 : f32 to vector<16x128xf32>
    %121 = arith.maximumf %119, %120 : vector<16x128xf32>
    %cst_41 = arith.constant dense<0.000000e+00> : vector<16xf32>
    %122 = vector.multi_reduction <add>, %121, %cst_41 [1] : vector<16x128xf32> to vector<16xf32>
    %123 = vector.shape_cast %122 : vector<16xf32> to vector<16x1xf32>
    %cst_42 = arith.constant 1.280000e+02 : f32
    %124 = vector.broadcast %cst_42 : f32 to vector<16x1xf32>
    %125 = arith.divf %123, %124 : vector<16x1xf32>
    %126 = vector.broadcast %125 : vector<16x1xf32> to vector<16x128xf32>
    %127 = arith.subf %121, %126 : vector<16x128xf32>
    %128 = arith.mulf %127, %127 : vector<16x128xf32>
    %cst_43 = arith.constant dense<0.000000e+00> : vector<16xf32>
    %129 = vector.multi_reduction <add>, %128, %cst_43 [1] : vector<16x128xf32> to vector<16xf32>
    %130 = vector.shape_cast %129 : vector<16xf32> to vector<16x1xf32>
    %cst_44 = arith.constant 1.280000e+02 : f32
    %131 = vector.broadcast %cst_44 : f32 to vector<16x1xf32>
    %132 = arith.divf %130, %131 : vector<16x1xf32>
    %133 = vector.broadcast %125 : vector<16x1xf32> to vector<16x128xf32>
    %134 = arith.subf %121, %133 : vector<16x128xf32>
    %cst_45 = arith.constant 9.99999974E-6 : f32
    %135 = vector.broadcast %cst_45 : f32 to vector<16x1xf32>
    %136 = arith.addf %132, %135 : vector<16x1xf32>
    %137 = math.rsqrt %136 : vector<16x1xf32>
    %138 = vector.broadcast %137 : vector<16x1xf32> to vector<16x128xf32>
    %139 = arith.mulf %134, %138 : vector<16x128xf32>
    %140 = vector.broadcast %9 : vector<1x128xf32> to vector<16x128xf32>
    %141 = arith.mulf %139, %140 : vector<16x128xf32>
    %142 = vector.broadcast %10 : vector<1x128xf32> to vector<16x128xf32>
    %143 = arith.addf %141, %142 : vector<16x128xf32>
    %144 = arith.truncf %143 : vector<16x128xf32> to vector<16x128xbf16>
    %145 = arith.truncf %39 : vector<1x128xf32> to vector<1x128xbf16>
    %cst_46 = arith.constant dense<0.000000e+00> : vector<1x16xf32>
    %146 = tpu.matmul %145, %116, %cst_46 {dimension_numbers = #tpu.dot_dimension_numbers<[1], [1], [0], [0], [0, 0, 1, 0], [], []>} : vector<1x128xbf16>, vector<16x128xbf16>, vector<1x16xf32> -> vector<1x16xf32>
    %147 = arith.mulf %39, %63 : vector<1x128xf32>
    %cst_47 = arith.constant dense<0.000000e+00> : vector<1xf32>
    %148 = vector.multi_reduction <add>, %147, %cst_47 [1] : vector<1x128xf32> to vector<1xf32>
    %149 = vector.shape_cast %148 : vector<1xf32> to vector<1x1xf32>
    %cst_48 = arith.constant dense<0xFF800000> : vector<1xf32>
    %150 = vector.multi_reduction <maximumf>, %146, %cst_48 [1] : vector<1x16xf32> to vector<1xf32>
    %151 = vector.shape_cast %150 : vector<1xf32> to vector<1x1xf32>
    %152 = arith.maximumf %151, %149 : vector<1x1xf32>
    %153 = vector.broadcast %152 : vector<1x1xf32> to vector<1x16xf32>
    %154 = arith.subf %146, %153 : vector<1x16xf32>
    %155 = math.exp %154 : vector<1x16xf32>
    %156 = arith.subf %149, %152 : vector<1x1xf32>
    %157 = math.exp %156 : vector<1x1xf32>
    %cst_49 = arith.constant dense<0.000000e+00> : vector<1xf32>
    %158 = vector.multi_reduction <add>, %155, %cst_49 [1] : vector<1x16xf32> to vector<1xf32>
    %159 = vector.shape_cast %158 : vector<1xf32> to vector<1x1xf32>
    %160 = arith.addf %157, %159 : vector<1x1xf32>
    %cst_50 = arith.constant 1.000000e+00 : f32
    %161 = vector.broadcast %cst_50 : f32 to vector<1x1xf32>
    %162 = arith.divf %161, %160 : vector<1x1xf32>
    %163 = vector.broadcast %162 : vector<1x1xf32> to vector<1x16xf32>
    %164 = arith.mulf %155, %163 : vector<1x16xf32>
    %165 = arith.mulf %157, %162 : vector<1x1xf32>
    %166 = vector.broadcast %165 : vector<1x1xf32> to vector<1x128xf32>
    %167 = arith.mulf %166, %87 : vector<1x128xf32>
    %168 = arith.truncf %164 : vector<1x16xf32> to vector<1x16xbf16>
    %cst_51 = arith.constant dense<0.000000e+00> : vector<1x128xf32>
    %169 = tpu.matmul %168, %144, %cst_51 {dimension_numbers = #tpu.dot_dimension_numbers<[1], [0], [0], [1], [0, 0, 1, 1], [], []>} : vector<1x16xbf16>, vector<16x128xbf16>, vector<1x128xf32> -> vector<1x128xf32>
    %170 = arith.addf %167, %169 : vector<1x128xf32>
    %171 = arith.truncf %170 : vector<1x128xf32> to vector<1x128xbf16>
    %c0_52 = arith.constant 0 : index
    %c0_53 = arith.constant 0 : index
    %172 = vector.load %arg7[%c0_52, %c0_53] : memref<128x32xbf16, #tpu.memory_space<vmem>>, vector<128x32xbf16>
    %cst_54 = arith.constant dense<0.000000e+00> : vector<1x32xf32>
    %173 = tpu.matmul %171, %172, %cst_54 {dimension_numbers = #tpu.dot_dimension_numbers<[1], [0], [0], [1], [0, 0, 1, 1], [], []>} : vector<1x128xbf16>, vector<128x32xbf16>, vector<1x32xf32> -> vector<1x32xf32>
    %c0_55 = arith.constant 0 : index
    %c0_56 = arith.constant 0 : index
    %c0_57 = arith.constant 0 : index
    %174 = vector.load %arg8[%c0_55, %c0_56, %c0_57] : memref<1x1x32xf32, #tpu.memory_space<vmem>>, vector<1x1x32xf32>
    %175 = vector.shape_cast %174 : vector<1x1x32xf32> to vector<1x32xf32>
    %176 = vector.shape_cast %173 : vector<1x32xf32> to vector<1x1x32xf32>
    tpu.vector_store %arg8[%c0_55, %c0_56, %c0_57], %176 {strides = array<i32>} : memref<1x1x32xf32, #tpu.memory_space<vmem>>, vector<1x1x32xf32>,
    %c0_58 = arith.constant 0 : index
    %c0_59 = arith.constant 0 : index
    %c0_60 = arith.constant 0 : index
    %177 = vector.load %arg9[%c0_58, %c0_59, %c0_60] : memref<1x1x16xf32, #tpu.memory_space<vmem>>, vector<1x1x16xf32>
    %178 = vector.shape_cast %177 : vector<1x1x16xf32> to vector<1x16xf32>
    %179 = vector.shape_cast %164 : vector<1x16xf32> to vector<1x1x16xf32>
    tpu.vector_store %arg9[%c0_58, %c0_59, %c0_60], %179 {strides = array<i32>} : memref<1x1x16xf32, #tpu.memory_space<vmem>>, vector<1x1x16xf32>,
    return
  }
  func.func @transform_0(%arg0: i32) -> (i32, i32, i32) {
    %c0_i32 = arith.constant 0 : i32
    %c0_i32_0 = arith.constant 0 : i32
    %c0_i32_1 = arith.constant 0 : i32
    return %arg0, %c0_i32, %c0_i32_0 : i32, i32, i32
  }
  func.func @transform_1(%arg0: i32) -> (i32, i32, i32) {
    %c0_i32 = arith.constant 0 : i32
    %c0_i32_0 = arith.constant 0 : i32
    %c0_i32_1 = arith.constant 0 : i32
    return %arg0, %c0_i32, %c0_i32_0 : i32, i32, i32
  }
  func.func @transform_2(%arg0: i32) -> (i32, i32, i32) {
    %c0_i32 = arith.constant 0 : i32
    %c0_i32_0 = arith.constant 0 : i32
    %c0_i32_1 = arith.constant 0 : i32
    return %arg0, %c0_i32, %c0_i32_0 : i32, i32, i32
  }
  func.func @transform_3(%arg0: i32) -> (i32, i32) {
    %c0_i32 = arith.constant 0 : i32
    %c0_i32_0 = arith.constant 0 : i32
    %c0_i32_1 = arith.constant 0 : i32
    return %c0_i32, %c0_i32_0 : i32, i32
  }
  func.func @transform_4(%arg0: i32) -> (i32, i32) {
    %c0_i32 = arith.constant 0 : i32
    %c0_i32_0 = arith.constant 0 : i32
    %c0_i32_1 = arith.constant 0 : i32
    return %c0_i32, %c0_i32_0 : i32, i32
  }
  func.func @transform_5(%arg0: i32) -> (i32, i32) {
    %c0_i32 = arith.constant 0 : i32
    %c0_i32_0 = arith.constant 0 : i32
    %c0_i32_1 = arith.constant 0 : i32
    return %c0_i32, %c0_i32_0 : i32, i32
  }
  func.func @transform_6(%arg0: i32) -> (i32, i32) {
    %c0_i32 = arith.constant 0 : i32
    %c0_i32_0 = arith.constant 0 : i32
    %c0_i32_1 = arith.constant 0 : i32
    return %c0_i32, %c0_i32_0 : i32, i32
  }
  func.func @transform_7(%arg0: i32) -> (i32, i32, i32) {
    %c0_i32 = arith.constant 0 : i32
    %c0_i32_0 = arith.constant 0 : i32
    %c0_i32_1 = arith.constant 0 : i32
    return %arg0, %c0_i32, %c0_i32_0 : i32, i32, i32
  }
  func.func @transform_8(%arg0: i32) -> (i32, i32, i32) {
    %c0_i32 = arith.constant 0 : i32
    %c0_i32_0 = arith.constant 0 : i32
    %c0_i32_1 = arith.constant 0 : i32
    return %arg0, %c0_i32, %c0_i32_0 : i32, i32, i32
  }
}

</mosaic_0001>

<llo_original>
// kernel: mul.33
$region0: #{mul.33}
  %s0 = inlined_call_operand.vmem [shape: f32[2,64], index: 0, kind: input, shape index: {}]
  %s1 = inlined_call_operand.vmem [shape: f32[2,8,8], index: 1, kind: output, shape index: {}]
  $region1: #{mul.33} parent=0
    #allocation0 [shape = 'u8[4096]{0}', space=vmem, size = 0x1000, scoped, tag = 'scoped mem for input reshape']
    %s3 = ssub.s32 4, 1
    %v4 = vld [vmem:[%s0] sm:%s3]
    %5 = vst [vmem:[#allocation0] sm:%s3] %v4
    %v6 = vld [vmem:[#allocation0] sm:$0x3]
    %vm7 = vcmask 64512
    %8 = vst.msk [vmem:[%s1] ss:$8 sm:$0x3] %vm7, %v6
    %v9 = vld [vmem:[#allocation0] sm:$0x3]
    %10 = vrot.lane.b32.xlu0 %v9, 120
    %v11 = vpop.permute.xlu0 %10
    %vm12 = vcmask 64512
    %s13 = scalar_lea.vmem %s1, 1
    %14 = vst.msk [vmem:[%s13] ss:$8 sm:$0x3] %vm12, %v11
    %v15 = vld [vmem:[#allocation0] sm:$0x3]
    %16 = vrot.lane.b32.xlu0 %v15, 112
    %v17 = vpop.permute.xlu0 %16
    %vm18 = vcmask 64512
    %s19 = scalar_lea.vmem %s1, 2
    %20 = vst.msk [vmem:[%s19] ss:$8 sm:$0x3] %vm18, %v17
    %v21 = vld [vmem:[#allocation0] sm:$0x3]
    %22 = vrot.lane.b32.xlu0 %v21, 104
    %v23 = vpop.permute.xlu0 %22
    %vm24 = vcmask 64512
    %s25 = scalar_lea.vmem %s1, 3
    %26 = vst.msk [vmem:[%s25] ss:$8 sm:$0x3] %vm24, %v23
    %v27 = vld [vmem:[#allocation0] sm:$0x3]
    %28 = vrot.lane.b32.xlu0 %v27, 96
    %v29 = vpop.permute.xlu0 %28
    %vm30 = vcmask 64512
    %s31 = scalar_lea.vmem %s1, 4
    %32 = vst.msk [vmem:[%s31] ss:$8 sm:$0x3] %vm30, %v29
    %v33 = vld [vmem:[#allocation0] sm:$0x3]
    %34 = vrot.lane.b32.xlu0 %v33, 88
    %v35 = vpop.permute.xlu0 %34
    %vm36 = vcmask 64512
    %s37 = scalar_lea.vmem %s1, 5
    %38 = vst.msk [vmem:[%s37] ss:$8 sm:$0x3] %vm36, %v35
    %v39 = vld [vmem:[#allocation0] sm:$0x3]
    %40 = vrot.lane.b32.xlu0 %v39, 80
    %v41 = vpop.permute.xlu0 %40
    %vm42 = vcmask 64512
    %s43 = scalar_lea.vmem %s1, 6
    %44 = vst.msk [vmem:[%s43] ss:$8 sm:$0x3] %vm42, %v41
    %v45 = vld [vmem:[#allocation0] sm:$0x3]
    %46 = vrot.lane.b32.xlu0 %v45, 72
    %v47 = vpop.permute.xlu0 %46
    %vm48 = vcmask 64512
    %s49 = scalar_lea.vmem %s1, 7
    %50 = vst.msk [vmem:[%s49] ss:$8 sm:$0x3] %vm48, %v47

// kernel: mul.37
$region0: #{mul.37}
  %s0 = inlined_call_operand.vmem [shape: f32[2,16], index: 0, kind: input, shape index: {}]
  %s1 = inlined_call_operand.vmem [shape: f32[2,4,4], index: 1, kind: output, shape index: {}]
  $region1: #{mul.37} parent=0
    #allocation0 [shape = 'u8[8192]{0}', space=vmem, size = 0x2000, scoped, tag = 'scoped mem for output reshape']
    #allocation1 [shape = 'u8[4096]{0}', space=vmem, size = 0x1000, scoped, tag = 'scoped mem for input reshape']
    %s3 = ssub.s32 4, 1
    %v4 = vld [vmem:[%s0] sm:%s3]
    %5 = vst [vmem:[#allocation1] sm:%s3] %v4
    %v6 = vld [vmem:[#allocation1] sm:$0x3]
    %vm7 = vcmask 31744
    %8 = vst.msk [vmem:[#allocation0] ss:$8 sm:$0x3] %vm7, %v6
    %v9 = vld [vmem:[#allocation1] sm:$0x3]
    %10 = vrot.lane.b32.xlu0 %v9, 124
    %v11 = vpop.permute.xlu0 %10
    %vm12 = vcmask 31744
    %s13 = scalar_lea.vmem [#allocation0], 1
    %14 = vst.msk [vmem:[%s13] ss:$8 sm:$0x3] %vm12, %v11
    %v15 = vld [vmem:[#allocation1] sm:$0x3]
    %16 = vrot.lane.b32.xlu0 %v15, 120
    %v17 = vpop.permute.xlu0 %16
    %vm18 = vcmask 31744
    %s19 = scalar_lea.vmem [#allocation0], 2
    %20 = vst.msk [vmem:[%s19] ss:$8 sm:$0x3] %vm18, %v17
    %v21 = vld [vmem:[#allocation1] sm:$0x3]
    %22 = vrot.lane.b32.xlu0 %v21, 116
    %v23 = vpop.permute.xlu0 %22
    %vm24 = vcmask 31744
    %s25 = scalar_lea.vmem [#allocation0], 3
    %26 = vst.msk [vmem:[%s25] ss:$8 sm:$0x3] %vm24, %v23
    %s28 = ssub.s32 16, 1
    %v29 = vld [vmem:[#allocation0] sm:%s28]
    %s31 = ssub.s32 16, 1
    %32 = vst [vmem:[%s1] sm:%s31] %v29
    %s33 = scalar_lea.vmem [#allocation0], 8
    %v34 = vld [vmem:[%s33] sm:%s28]
    %s36 = ssub.s32 16, 1
    %s37 = scalar_lea.vmem %s1, 4
    %38 = vst [vmem:[%s37] sm:%s36] %v34

// kernel: model_forward.2
$region0: #{model_forward.2}
  #allocation0 [shape = 'u32[]', space=smem, size = 0x4, offset = 0x4, fixed_abs, tag = 'smem constant byte address 0x4 - core index']
  #allocation1 [shape = 'u32[72,128]{1,0:T(1,128)}', space=vmem, size = 0x9000, scoped, tag = 'internal scratch']
  %s0 = inlined_call_operand.vmem [shape: bf16[2,64,16], index: 0, kind: input, shape index: {}]
  %s1 = inlined_call_operand.vmem [shape: bf16[2,1,16], index: 1, kind: input, shape index: {}]
  %s2 = inlined_call_operand.vmem [shape: f32[2,3,128], index: 2, kind: input, shape index: {}]
  %s3 = inlined_call_operand.vmem [shape: bf16[16,384], index: 3, kind: input, shape index: {}]
  %s4 = inlined_call_operand.vmem [shape: f32[1,128], index: 4, kind: input, shape index: {}]
  %s5 = inlined_call_operand.vmem [shape: f32[1,128], index: 5, kind: input, shape index: {}]
  %s6 = inlined_call_operand.vmem [shape: bf16[128,16], index: 6, kind: input, shape index: {}]
  %s7 = inlined_call_operand.hbm [shape: f32[2,1,16], index: 7, kind: output, shape index: {0}]
  %s8 = inlined_call_operand.vmem [shape: f32[2,1,64], index: 8, kind: output, shape index: {1}]
  %9 = xla_tuple %s7, %s8
  %s10 = sld [smem:[#allocation0]]
  $region69: #{model_forward.2} parent=0
    _
  %s12 = ssub.s32 1, %s10
  %s13 = scalar_select 0, %s12, %s10
  $region1: #{model_forward.2} parent=0
    #allocation2 [shape = 'u8[1024]{0}', space=vmem, size = 0x400, scoped, tag = 'output window, operand 0']
    #allocation3 [shape = 's32[2]{0}', space=sflag, size = 0x8, scoped, tag = 'scoped memory for model_forward.2']
    %14 = vsyncpa [#allocation3], 0
    %s15 = scalar_lea.sflag [#allocation3], 1
    %16 = vsyncpa %s15, 0
    loop: start=0, step=1, limit=4
    $region2: #{model_forward.2} parent=1 // loop_pre_header
      _
    $region3: #{model_forward.2} parent=1 // loop_header
      %s18 = sphi 0, %s22
      %p19 = scmp.ge.s32.totalorder %s18, 4
      %s28 = sphi 0, %s30
      %s31 = sphi 0, %s28
      %s32 = sphi 0, %s31
      %s48 = sphi 0, %s32
      %s54 = sphi 0, %s56
      %s57 = sphi 0, %s54
      %s58 = sphi 0, %s57
      %s74 = sphi 0, %s58
      %s80 = sphi 0, %s82
      %s83 = sphi 0, %s80
      %s84 = sphi 0, %s83
      %s100 = sphi 0, %s84
      %s104 = sphi 0, %s104
      %s106 = sphi 0, %s104
      %s107 = sphi 0, %s106
      %s121 = sphi 0, %s107
      %s125 = sphi 0, %s125
      %s127 = sphi 0, %s125
      %s128 = sphi 0, %s127
      %s142 = sphi 0, %s128
      %s146 = sphi 0, %s146
      %s148 = sphi 0, %s146
      %s149 = sphi 0, %s148
      %s163 = sphi 0, %s149
      %s167 = sphi 0, %s167
      %s169 = sphi 0, %s167
      %s170 = sphi 0, %s169
      %s184 = sphi 0, %s170
      %s190 = sphi 0, %s192
      %s193 = sphi 0, %s190
      %s194 = sphi 0, %s193
      %s210 = sphi 0, %s194
      %s216 = sphi 0, %s218
      %s219 = sphi 0, %s216
      %s220 = sphi 0, %s219
      %s236 = sphi 0, %s220
    $region4: #{model_forward.2} parent=1 // loop_header_branch
      %21 = sbr.rel (%p19) target = $region8
    $region5: #{model_forward.2} parent=1 // loop_body
      %s23 = ssub.s32 %s18, 1
      %s24 = ssub.s32 %s18, 2
      %s25 = sadd.s32 %s18, 1
      %s26 = ssub.s32 %s18, %s25
      %p27 = scmp.eq.s32.totalorder %s26, 0
      %s29 = sadd.s32 %s28, 1
      %s30 = scalar_select %p27, %s28, %s29
      %p33 = pneg %p27
      %p34 = scmp.eq.s32.totalorder %s18, 1
      %p35 = por %p33, %p34
      %p36 = scmp.ne.s32.totalorder %s28, %s31
      %p37 = scmp.eq.s32.totalorder %s18, 0
      %p38 = por %p36, %p37
      %p39 = scmp.ne.s32.totalorder %s28, %s31
      %p40 = scmp.eq.s32.totalorder %s23, 1
      %p41 = por %p39, %p40
      %p42 = scmp.ne.s32.totalorder %s31, %s32
      %p43 = scmp.eq.s32.totalorder %s23, 0
      %p44 = por %p42, %p43
      %p45 = scmp.ne.s32.totalorder %s31, %s32
      %p46 = scmp.eq.s32.totalorder %s24, 1
      %p47 = por %p45, %p46
      %p49 = scmp.ne.s32.totalorder %s32, %s48
      %p50 = scmp.eq.s32.totalorder %s24, 0
      %p51 = por %p49, %p50
      %s52 = ssub.s32 %s18, %s25
      %p53 = scmp.eq.s32.totalorder %s52, 0
      %s55 = sadd.s32 %s54, 1
      %s56 = scalar_select %p53, %s54, %s55
      %p59 = pneg %p53
      %p60 = scmp.eq.s32.totalorder %s18, 1
      %p61 = por %p59, %p60
      %p62 = scmp.ne.s32.totalorder %s54, %s57
      %p63 = scmp.eq.s32.totalorder %s18, 0
      %p64 = por %p62, %p63
      %p65 = scmp.ne.s32.totalorder %s54, %s57
      %p66 = scmp.eq.s32.totalorder %s23, 1
      %p67 = por %p65, %p66
      %p68 = scmp.ne.s32.totalorder %s57, %s58
      %p69 = scmp.eq.s32.totalorder %s23, 0
      %p70 = por %p68, %p69
      %p71 = scmp.ne.s32.totalorder %s57, %s58
      %p72 = scmp.eq.s32.totalorder %s24, 1
      %p73 = por %p71, %p72
      %p75 = scmp.ne.s32.totalorder %s58, %s74
      %p76 = scmp.eq.s32.totalorder %s24, 0
      %p77 = por %p75, %p76
      %s78 = ssub.s32 %s18, %s25
      %p79 = scmp.eq.s32.totalorder %s78, 0
      %s81 = sadd.s32 %s80, 1
      %s82 = scalar_select %p79, %s80, %s81
      %p85 = pneg %p79
      %p86 = scmp.eq.s32.totalorder %s18, 1
      %p87 = por %p85, %p86
      %p88 = scmp.ne.s32.totalorder %s80, %s83
      %p89 = scmp.eq.s32.totalorder %s18, 0
      %p90 = por %p88, %p89
      %p91 = scmp.ne.s32.totalorder %s80, %s83
      %p92 = scmp.eq.s32.totalorder %s23, 1
      %p93 = por %p91, %p92
      %p94 = scmp.ne.s32.totalorder %s83, %s84
      %p95 = scmp.eq.s32.totalorder %s23, 0
      %p96 = por %p94, %p95
      %p97 = scmp.ne.s32.totalorder %s83, %s84
      %p98 = scmp.eq.s32.totalorder %s24, 1
      %p99 = por %p97, %p98
      %p101 = scmp.ne.s32.totalorder %s84, %s100
      %p102 = scmp.eq.s32.totalorder %s24, 0
      %p103 = por %p101, %p102
      %s105 = sadd.s32 %s104, 1
      %p108 = scmp.eq.s32.totalorder %s18, 1
      %p109 = scmp.ne.s32.totalorder %s104, %s106
      %p110 = scmp.eq.s32.totalorder %s18, 0
      %p111 = por %p109, %p110
      %p112 = scmp.ne.s32.totalorder %s104, %s106
      %p113 = scmp.eq.s32.totalorder %s23, 1
      %p114 = por %p112, %p113
      %p115 = scmp.ne.s32.totalorder %s106, %s107
      %p116 = scmp.eq.s32.totalorder %s23, 0
      %p117 = por %p115, %p116
      %p118 = scmp.ne.s32.totalorder %s106, %s107
      %p119 = scmp.eq.s32.totalorder %s24, 1
      %p120 = por %p118, %p119
      %p122 = scmp.ne.s32.totalorder %s107, %s121
      %p123 = scmp.eq.s32.totalorder %s24, 0
      %p124 = por %p122, %p123
      %s126 = sadd.s32 %s125, 1
      %p129 = scmp.eq.s32.totalorder %s18, 1
      %p130 = scmp.ne.s32.totalorder %s125, %s127
      %p131 = scmp.eq.s32.totalorder %s18, 0
      %p132 = por %p130, %p131
      %p133 = scmp.ne.s32.totalorder %s125, %s127
      %p134 = scmp.eq.s32.totalorder %s23, 1
      %p135 = por %p133, %p134
      %p136 = scmp.ne.s32.totalorder %s127, %s128
      %p137 = scmp.eq.s32.totalorder %s23, 0
      %p138 = por %p136, %p137
      %p139 = scmp.ne.s32.totalorder %s127, %s128
      %p140 = scmp.eq.s32.totalorder %s24, 1
      %p141 = por %p139, %p140
      %p143 = scmp.ne.s32.totalorder %s128, %s142
      %p144 = scmp.eq.s32.totalorder %s24, 0
      %p145 = por %p143, %p144
      %s147 = sadd.s32 %s146, 1
      %p150 = scmp.eq.s32.totalorder %s18, 1
      %p151 = scmp.ne.s32.totalorder %s146, %s148
      %p152 = scmp.eq.s32.totalorder %s18, 0
      %p153 = por %p151, %p152
      %p154 = scmp.ne.s32.totalorder %s146, %s148
      %p155 = scmp.eq.s32.totalorder %s23, 1
      %p156 = por %p154, %p155
      %p157 = scmp.ne.s32.totalorder %s148, %s149
      %p158 = scmp.eq.s32.totalorder %s23, 0
      %p159 = por %p157, %p158
      %p160 = scmp.ne.s32.totalorder %s148, %s149
      %p161 = scmp.eq.s32.totalorder %s24, 1
      %p162 = por %p160, %p161
      %p164 = scmp.ne.s32.totalorder %s149, %s163
      %p165 = scmp.eq.s32.totalorder %s24, 0
      %p166 = por %p164, %p165
      %s168 = sadd.s32 %s167, 1
      %p171 = scmp.eq.s32.totalorder %s18, 1
      %p172 = scmp.ne.s32.totalorder %s167, %s169
      %p173 = scmp.eq.s32.totalorder %s18, 0
      %p174 = por %p172, %p173
      %p175 = scmp.ne.s32.totalorder %s167, %s169
      %p176 = scmp.eq.s32.totalorder %s23, 1
      %p177 = por %p175, %p176
      %p178 = scmp.ne.s32.totalorder %s169, %s170
      %p179 = scmp.eq.s32.totalorder %s23, 0
      %p180 = por %p178, %p179
      %p181 = scmp.ne.s32.totalorder %s169, %s170
      %p182 = scmp.eq.s32.totalorder %s24, 1
      %p183 = por %p181, %p182
      %p185 = scmp.ne.s32.totalorder %s170, %s184
      %p186 = scmp.eq.s32.totalorder %s24, 0
      %p187 = por %p185, %p186
      %s188 = ssub.s32 %s18, %s25
      %p189 = scmp.eq.s32.totalorder %s188, 0
      %s191 = sadd.s32 %s190, 1
      %s192 = scalar_select %p189, %s190, %s191
      %p195 = pneg %p189
      %p196 = scmp.eq.s32.totalorder %s18, 1
      %p197 = por %p195, %p196
      %p198 = scmp.ne.s32.totalorder %s190, %s193
      %p199 = scmp.eq.s32.totalorder %s18, 0
      %p200 = por %p198, %p199
      %p201 = scmp.ne.s32.totalorder %s190, %s193
      %p202 = scmp.eq.s32.totalorder %s23, 1
      %p203 = por %p201, %p202
      %p204 = scmp.ne.s32.totalorder %s193, %s194
      %p205 = scmp.eq.s32.totalorder %s23, 0
      %p206 = por %p204, %p205
      %p207 = scmp.ne.s32.totalorder %s193, %s194
      %p208 = scmp.eq.s32.totalorder %s24, 1
      %p209 = por %p207, %p208
      %p211 = scmp.ne.s32.totalorder %s194, %s210
      %p212 = scmp.eq.s32.totalorder %s24, 0
      %p213 = por %p211, %p212
      %s214 = ssub.s32 %s18, %s25
      %p215 = scmp.eq.s32.totalorder %s214, 0
      %s217 = sadd.s32 %s216, 1
      %s218 = scalar_select %p215, %s216, %s217
      %p221 = pneg %p215
      %p222 = scmp.eq.s32.totalorder %s18, 1
      %p223 = por %p221, %p222
      %p224 = scmp.ne.s32.totalorder %s216, %s219
      %p225 = scmp.eq.s32.totalorder %s18, 0
      %p226 = por %p224, %p225
      %p227 = scmp.ne.s32.totalorder %s216, %s219
      %p228 = scmp.eq.s32.totalorder %s23, 1
      %p229 = por %p227, %p228
      %p230 = scmp.ne.s32.totalorder %s219, %s220
      %p231 = scmp.eq.s32.totalorder %s23, 0
      %p232 = por %p230, %p231
      %p233 = scmp.ne.s32.totalorder %s219, %s220
      %p234 = scmp.eq.s32.totalorder %s24, 1
      %p235 = por %p233, %p234
      %p237 = scmp.ne.s32.totalorder %s220, %s236
      %p238 = scmp.eq.s32.totalorder %s24, 0
      %p239 = por %p237, %p238
      %p240 = scmp.le.s32.totalorder 1, %s18
      %p241 = scmp.lt.s32.totalorder %s18, 3
      %p242 = pnand %p240, %p241
      %p243 = pneg %p242
      // Predicated region
      $region9: #{model_forward.2} parent=5 // pred_check
        _
      $region10: #{model_forward.2} parent=5 // pred_check_branch
        %245 = sbr.rel (%p242) target = $region12
      $region11: #{model_forward.2} parent=5 // pred_region
        %s246 = ssub.s32 %s18, 1
        // Predicated region
        $region13: #{model_forward.2} parent=11 // pred_check
          %p247 = pneg %p117
        $region14: #{model_forward.2} parent=11 // pred_check_branch
          %249 = sbr.rel (%p247) target = $region16
        $region15: #{model_forward.2} parent=11 // pred_region
          _
        $region16: #{model_forward.2} parent=11 // pred_fallthru
          _
        // Predicated region
        $region17: #{model_forward.2} parent=11 // pred_check
          %p250 = pneg %p138
        $region18: #{model_forward.2} parent=11 // pred_check_branch
          %252 = sbr.rel (%p250) target = $region20
        $region19: #{model_forward.2} parent=11 // pred_region
          _
        $region20: #{model_forward.2} parent=11 // pred_fallthru
          _
        // Predicated region
        $region21: #{model_forward.2} parent=11 // pred_check
          %p253 = pneg %p159
        $region22: #{model_forward.2} parent=11 // pred_check_branch
          %255 = sbr.rel (%p253) target = $region24
        $region23: #{model_forward.2} parent=11 // pred_region
          _
        $region24: #{model_forward.2} parent=11 // pred_fallthru
          _
        // Predicated region
        $region25: #{model_forward.2} parent=11 // pred_check
          %p256 = pneg %p180
        $region26: #{model_forward.2} parent=11 // pred_check_branch
          %258 = sbr.rel (%p256) target = $region28
        $region27: #{model_forward.2} parent=11 // pred_region
          _
        $region28: #{model_forward.2} parent=11 // pred_fallthru
          _
      $region12: #{model_forward.2} parent=5 // pred_fallthru
        _
      %p259 = scmp.lt.s32.totalorder %s18, 2
      // Predicated region
      $region29: #{model_forward.2} parent=5 // pred_check
        %p260 = pneg %p259
      $region30: #{model_forward.2} parent=5 // pred_check_branch
        %262 = sbr.rel (%p260) target = $region32
      $region31: #{model_forward.2} parent=5 // pred_region
        // Predicated region
        $region33: #{model_forward.2} parent=31 // pred_check
          %p263 = pneg %p38
        $region34: #{model_forward.2} parent=31 // pred_check_branch
          %265 = sbr.rel (%p263) target = $region36
        $region35: #{model_forward.2} parent=31 // pred_region
          %p266 = scmp.lt.s32.totalorder %s18, 1
          %s267 = scalar_select %p266, %s18, 1
          %s268 = smul.addr %s267, 8
          %s269 = smul.addr %s268, 4
          %s270 = scalar_lea.vmem %s0, %s269
        $region36: #{model_forward.2} parent=31 // pred_fallthru
          _
        // Predicated region
        $region37: #{model_forward.2} parent=31 // pred_check
          %p271 = pneg %p64
        $region38: #{model_forward.2} parent=31 // pred_check_branch
          %273 = sbr.rel (%p271) target = $region40
        $region39: #{model_forward.2} parent=31 // pred_region
          %p274 = scmp.lt.s32.totalorder %s18, 1
          %s275 = scalar_select %p274, %s18, 1
          %s276 = scalar_lea.vmem %s1, %s275
        $region40: #{model_forward.2} parent=31 // pred_fallthru
          _
        // Predicated region
        $region41: #{model_forward.2} parent=31 // pred_check
          %p277 = pneg %p90
        $region42: #{model_forward.2} parent=31 // pred_check_branch
          %279 = sbr.rel (%p277) target = $region44
        $region43: #{model_forward.2} parent=31 // pred_region
          %p280 = scmp.lt.s32.totalorder %s18, 1
          %s281 = scalar_select %p280, %s18, 1
          %s282 = smul.addr %s281, 4
          %s283 = scalar_lea.vmem %s2, %s282
        $region44: #{model_forward.2} parent=31 // pred_fallthru
          _
      $region32: #{model_forward.2} parent=5 // pred_fallthru
        _
      %p284 = scmp.le.s32.totalorder 1, %s18
      %p285 = scmp.lt.s32.totalorder %s18, 3
      %p286 = pnand %p284, %p285
      %p287 = pneg %p286
      // Predicated region
      $region45: #{model_forward.2} parent=5 // pred_check
        _
      $region46: #{model_forward.2} parent=5 // pred_check_branch
        %289 = sbr.rel (%p286) target = $region48
      $region47: #{model_forward.2} parent=5 // pred_region
        %s290 = ssub.s32 %s18, 1
        %p291 = scmp.lt.s32.totalorder %s23, 1
        %s292 = scalar_select %p291, %s23, 1
        %s293 = smul.addr %s292, 8
        %s294 = smul.addr %s293, 4
        %s295 = scalar_lea.vmem %s0, %s294
        %p296 = pneg %p44
        %p297 = pneg %p41
        %p298 = scmp.lt.s32.totalorder %s23, 1
        %s299 = scalar_select %p298, %s23, 1
        %s300 = scalar_lea.vmem %s1, %s299
        %p301 = pneg %p70
        %p302 = pneg %p67
        %p303 = scmp.lt.s32.totalorder %s23, 1
        %s304 = scalar_select %p303, %s23, 1
        %s305 = smul.addr %s304, 4
        %s306 = scalar_lea.vmem %s2, %s305
        %p307 = pneg %p96
        %p308 = pneg %p93
        %p309 = pneg %p117
        %p310 = pneg %p114
        %p311 = pneg %p138
        %p312 = pneg %p135
        %p313 = pneg %p159
        %p314 = pneg %p156
        %p315 = pneg %p180
        %p316 = pneg %p177
        %p317 = pneg %p206
        %p318 = pneg %p203
        %s319 = sand.u32 %s193, 1
        %s320 = scalar_lea.sflag [#allocation3], %s319
        %s321 = sand.u32 %s193, 1
        %s322 = scalar_lea.vmem [#allocation2], %s321
        %p323 = pneg %p232
        %p324 = pneg %p229
        %p325 = scmp.lt.s32.totalorder %s23, 1
        %s326 = scalar_select %p325, %s23, 1
        %s327 = scalar_lea.vmem %s8, %s326
        %p328 = scmp.lt.s32.totalorder %s23, 1
        %s329 = scalar_select %p328, %s23, 1
        %s330 = smul.addr %s329, 8
        %s331 = smul.addr %s330, 4
        %s332 = scalar_lea.vmem %s0, %s331
        %p333 = scmp.lt.s32.totalorder %s23, 1
        %s334 = scalar_select %p333, %s23, 1
        %s335 = scalar_lea.vmem %s1, %s334
        %p336 = scmp.lt.s32.totalorder %s23, 1
        %s337 = scalar_select %p336, %s23, 1
        %s338 = smul.addr %s337, 4
        %s339 = scalar_lea.vmem %s2, %s338
        %p340 = scmp.lt.s32.totalorder %s23, 1
        %s341 = scalar_select %p340, %s23, 1
        %s342 = scalar_lea.vmem %s8, %s341
        %v344 = vld [vmem:[%s332] sm:$0xf]
        %v345 = vld [vmem:[%s332 + $0x4] sm:$0xf]
        %v346 = vld [vmem:[%s332 + $0x8] sm:$0xf]
        %v347 = vld [vmem:[%s332 + $0xc] sm:$0xf]
        %v348 = vld [vmem:[%s332 + $0x10] sm:$0xf]
        %v349 = vld [vmem:[%s332 + $0x14] sm:$0xf]
        %v350 = vld [vmem:[%s332 + $0x18] sm:$0xf]
        %v351 = vld [vmem:[%s332 + $0x1c] sm:$0xf]
        %v352 = vld [vmem:[%s335] sm:$0x1]
        %v353 = vld [vmem:[%s339] sm:$0x7]
        %v354 = vld [vmem:[%s4] sm:$0x1]
        %v355 = vld [vmem:[%s5] sm:$0x1]
        %v356 = vld [vmem:[%s3] sm:$0xff]
        %v357 = vld [vmem:[%s3 + $0x8] sm:$0xf]
        %v358 = vld [vmem:[%s3 + $0xc] sm:$0xff]
        %v359 = vld [vmem:[%s3 + $0x14] sm:$0xf]
        %v364 = vunpack.c.l.b16 %v356
        %v365 = vunpack.c.h.b16 %v356
        %v366 = vunpack.c.l.b16 %v357
        %v367 = vunpack.c.l.b16 %v358
        %v368 = vunpack.c.h.b16 %v358
        %v369 = vunpack.c.l.b16 %v359
        %v370 = vpack.c.b16 %v367, %v364
        %v371 = vpack.c.b16 %v368, %v365
        %v372 = vpack.c.b16 %v369, %v366
        %vm376 = vcmask 130048
        %v378 = vsel %vm376, %v352, 0
        %380 = vmatpush.bf16.msra.mxu0 0
        %381 = vmatpush.bf16.msra.mxu0 0
        %382 = vmatpush.bf16.msra.mxu0 0
        %383 = vmatpush.bf16.msra.mxu0 0
        %384 = vmatpush.bf16.msra.mxu0 0
        %385 = vmatpush.bf16.msra.mxu0 0
        %386 = vmatpush.bf16.msra.mxu0 0
        %387 = vmatpush.bf16.msra.mxu0 %v370
        %388 = vmatmul.bf16.gmra.mxu0 %v378
        %v389 = vpop.f32.mrf.mxu0
        %v390 = vadd.f32 0.0, %v389
        %v391 = vpop.f32.mrf.mxu0
        %392 = vdwg.mxu0
        %393 = vmatpush.bf16.msra.mxu0 0
        %394 = vmatpush.bf16.msra.mxu0 0
        %395 = vmatpush.bf16.msra.mxu0 0
        %396 = vmatpush.bf16.msra.mxu0 0
        %397 = vmatpush.bf16.msra.mxu0 0
        %398 = vmatpush.bf16.msra.mxu0 0
        %399 = vmatpush.bf16.msra.mxu0 0
        %400 = vmatpush.bf16.msra.mxu0 %v371
        %401 = vmatmul.bf16.gmra.mxu0 %v378
        %v402 = vpop.f32.mrf.mxu0
        %v403 = vadd.f32 0.0, %v402
        %v404 = vpop.f32.mrf.mxu0
        %405 = vdwg.mxu0
        %406 = vmatpush.bf16.msra.mxu0 0
        %407 = vmatpush.bf16.msra.mxu0 0
        %408 = vmatpush.bf16.msra.mxu0 0
        %409 = vmatpush.bf16.msra.mxu0 0
        %410 = vmatpush.bf16.msra.mxu0 0
        %411 = vmatpush.bf16.msra.mxu0 0
        %412 = vmatpush.bf16.msra.mxu0 0
        %413 = vmatpush.bf16.msra.mxu0 %v372
        %414 = vmatmul.bf16.gmra.mxu0 %v378
        %v415 = vpop.f32.mrf.mxu0
        %v416 = vadd.f32 0.0, %v415
        %v417 = vpop.f32.mrf.mxu0
        %418 = vdwg.mxu0
        %v419 = vadd.f32 %v390, %v353
        %v420 = vmax.f32 %v419, 0.0
        %vm421 = vcmask 1040384
        %v422 = vsel %vm421, %v420, 0.0
        %423 = vadd.xlane.f32.xlu0 %v422
        %v424 = vpop.xlane.xlu0 %423
        %v425 = vrcp.pop 128.0
        %v426 = vmul.f32 128.0, %v425
        %v427 = vsub.f32 1.0, %v426
        %v428 = vmul.f32 %v425, %v427
        %v429 = vadd.f32 %v425, %v428
        %vm430 = vweird.f32 %v425
        %v431 = vsel %vm430, %v425, %v429
        %v432 = vmul.f32 %v424, %v431
        %v433 = vsub.f32 %v420, %v432
        %v434 = vmul.f32 %v433, %v433
        %v435 = vsel %vm421, %v434, 0.0
        %436 = vadd.xlane.f32.xlu0 %v435
        %v437 = vpop.xlane.xlu0 %436
        %v438 = vmul.f32 %v437, %v431
        %v439 = vadd.f32 %v438, 1e-05
        %v440 = vrsqrt.pop %v439
        %v441 = vmul.f32 %v440, %v439
        %v442 = vmul.f32 %v441, %v440
        %v443 = vmul.f32 0.5, %v442
        %v444 = vsub.f32 1.5, %v443
        %v445 = vmul.f32 %v440, %v444
        %vm446 = vweird.f32 %v439
        %vm447 = vweird.f32 %v440
        %vm448 = vmor %vm446, %vm447
        %v449 = vsel %vm448, %v440, %v445
        %v450 = vmul.f32 %v433, %v449
        %v451 = vmul.f32 %v450, %v354
        %v452 = vadd.f32 %v451, %v355
        %v453 = vmul.f32 %v452, 0.088388346
        %v455 = vrot.slane %v353, 1
        %v457 = vadd.f32 %v403, %v455
        %v458 = vmax.f32 %v457, 0.0
        %v459 = vsel %vm421, %v458, 0.0
        %460 = vadd.xlane.f32.xlu0 %v459
        %v461 = vpop.xlane.xlu0 %460
        %v462 = vmul.f32 %v461, %v431
        %v463 = vsub.f32 %v458, %v462
        %v464 = vmul.f32 %v463, %v463
        %v465 = vsel %vm421, %v464, 0.0
        %466 = vadd.xlane.f32.xlu0 %v465
        %v467 = vpop.xlane.xlu0 %466
        %v468 = vmul.f32 %v467, %v431
        %v469 = vadd.f32 %v468, 1e-05
        %v470 = vrsqrt.pop %v469
        %v471 = vmul.f32 %v470, %v469
        %v472 = vmul.f32 %v471, %v470
        %v473 = vmul.f32 0.5, %v472
        %v474 = vsub.f32 1.5, %v473
        %v475 = vmul.f32 %v470, %v474
        %vm476 = vweird.f32 %v469
        %vm477 = vweird.f32 %v470
        %vm478 = vmor %vm476, %vm477
        %v479 = vsel %vm478, %v470, %v475
        %v480 = vmul.f32 %v463, %v479
        %v481 = vmul.f32 %v480, %v354
        %v482 = vadd.f32 %v481, %v355
        %v483 = vrot.slane %v353, 2
        %v485 = vadd.f32 %v416, %v483
        %v486 = vmax.f32 %v485, 0.0
        %v487 = vsel %vm421, %v486, 0.0
        %488 = vadd.xlane.f32.xlu0 %v487
        %v489 = vpop.xlane.xlu0 %488
        %v490 = vmul.f32 %v489, %v431
        %v491 = vsub.f32 %v486, %v490
        %v492 = vmul.f32 %v491, %v491
        %v493 = vsel %vm421, %v492, 0.0
        %494 = vadd.xlane.f32.xlu0 %v493
        %v495 = vpop.xlane.xlu0 %494
        %v496 = vmul.f32 %v495, %v431
        %v497 = vadd.f32 %v496, 1e-05
        %v498 = vrsqrt.pop %v497
        %v499 = vmul.f32 %v498, %v497
        %v500 = vmul.f32 %v499, %v498
        %v501 = vmul.f32 0.5, %v500
        %v502 = vsub.f32 1.5, %v501
        %v503 = vmul.f32 %v498, %v502
        %vm504 = vweird.f32 %v497
        %vm505 = vweird.f32 %v498
        %vm506 = vmor %vm504, %vm505
        %v507 = vsel %vm506, %v498, %v503
        %v508 = vmul.f32 %v491, %v507
        %v509 = vmul.f32 %v508, %v354
        %v510 = vadd.f32 %v509, %v355
        %v519 = vunpack.c.l.b16 %v344
        %v520 = vunpack.c.l.b16 %v345
        %v521 = vunpack.c.l.b16 %v346
        %v522 = vunpack.c.l.b16 %v347
        %v523 = vunpack.c.l.b16 %v348
        %v524 = vunpack.c.l.b16 %v349
        %v525 = vunpack.c.l.b16 %v350
        %v526 = vunpack.c.l.b16 %v351
        %v527 = vpack.c.b16 %v520, %v519
        %v528 = vpack.c.b16 %v522, %v521
        %v529 = vpack.c.b16 %v524, %v523
        %v530 = vpack.c.b16 %v526, %v525
        %v532 = vsel %vm376, %v527, 0
        %v535 = vsel %vm376, %v528, 0
        %v538 = vsel %vm376, %v529, 0
        %v541 = vsel %vm376, %v530, 0
        %543 = vmatpush.bf16.msra.mxu0 0
        %544 = vmatpush.bf16.msra.mxu0 0
        %545 = vmatpush.bf16.msra.mxu0 0
        %546 = vmatpush.bf16.msra.mxu0 0
        %547 = vmatpush.bf16.msra.mxu0 0
        %548 = vmatpush.bf16.msra.mxu0 0
        %549 = vmatpush.bf16.msra.mxu0 0
        %550 = vmatpush.bf16.msra.mxu0 %v371
        %551 = vmatmul.bf16.gmra.mxu0 %v532
        %v552 = vpop.f32.mrf.mxu0
        %v553 = vadd.f32 0.0, %v552
        %v554 = vpop.f32.mrf.mxu0
        %v555 = vadd.f32 0.0, %v554
        %556 = vmatmul.bf16.gmra.mxu0 %v535
        %v557 = vpop.f32.mrf.mxu0
        %v558 = vadd.f32 0.0, %v557
        %v559 = vpop.f32.mrf.mxu0
        %v560 = vadd.f32 0.0, %v559
        %561 = vmatmul.bf16.gmra.mxu0 %v538
        %v562 = vpop.f32.mrf.mxu0
        %v563 = vadd.f32 0.0, %v562
        %v564 = vpop.f32.mrf.mxu0
        %v565 = vadd.f32 0.0, %v564
        %566 = vmatmul.bf16.gmra.mxu0 %v541
        %v567 = vpop.f32.mrf.mxu0
        %v568 = vadd.f32 0.0, %v567
        %v569 = vpop.f32.mrf.mxu0
        %v570 = vadd.f32 0.0, %v569
        %571 = vdwg.mxu0
        %572 = vmatpush.bf16.msra.mxu0 0
        %573 = vmatpush.bf16.msra.mxu0 0
        %574 = vmatpush.bf16.msra.mxu0 0
        %575 = vmatpush.bf16.msra.mxu0 0
        %576 = vmatpush.bf16.msra.mxu0 0
        %577 = vmatpush.bf16.msra.mxu0 0
        %578 = vmatpush.bf16.msra.mxu0 0
        %579 = vmatpush.bf16.msra.mxu0 %v372
        %580 = vmatmul.bf16.gmra.mxu0 %v532
        %v581 = vpop.f32.mrf.mxu0
        %v582 = vadd.f32 0.0, %v581
        %v583 = vpop.f32.mrf.mxu0
        %v584 = vadd.f32 0.0, %v583
        %585 = vmatmul.bf16.gmra.mxu0 %v535
        %v586 = vpop.f32.mrf.mxu0
        %v587 = vadd.f32 0.0, %v586
        %v588 = vpop.f32.mrf.mxu0
        %v589 = vadd.f32 0.0, %v588
        %590 = vmatmul.bf16.gmra.mxu0 %v538
        %v591 = vpop.f32.mrf.mxu0
        %v592 = vadd.f32 0.0, %v591
        %v593 = vpop.f32.mrf.mxu0
        %v594 = vadd.f32 0.0, %v593
        %595 = vmatmul.bf16.gmra.mxu0 %v541
        %v596 = vpop.f32.mrf.mxu0
        %v597 = vadd.f32 0.0, %v596
        %v598 = vpop.f32.mrf.mxu0
        %v599 = vadd.f32 0.0, %v598
        %600 = vdwg.mxu0
        %v601 = vperm.slane %v353, 1
        %v602 = vadd.f32 %v553, %v601
        %v603 = vadd.f32 %v555, %v601
        %v604 = vadd.f32 %v558, %v601
        %v605 = vadd.f32 %v560, %v601
        %v606 = vadd.f32 %v563, %v601
        %v607 = vadd.f32 %v565, %v601
        %v608 = vadd.f32 %v568, %v601
        %v609 = vadd.f32 %v570, %v601
        %v610 = vmax.f32 %v602, 0.0
        %v611 = vmax.f32 %v603, 0.0
        %v612 = vmax.f32 %v604, 0.0
        %v613 = vmax.f32 %v605, 0.0
        %v614 = vmax.f32 %v606, 0.0
        %v615 = vmax.f32 %v607, 0.0
        %v616 = vmax.f32 %v608, 0.0
        %v617 = vmax.f32 %v609, 0.0
        %618 = vadd.xlane.f32.xlu0 %v610
        %v619 = vpop.xlane.xlu0 %618
        %620 = vadd.xlane.f32.xlu0 %v611
        %v621 = vpop.xlane.xlu0 %620
        %622 = vadd.xlane.f32.xlu0 %v612
        %v623 = vpop.xlane.xlu0 %622
        %624 = vadd.xlane.f32.xlu0 %v613
        %v625 = vpop.xlane.xlu0 %624
        %626 = vadd.xlane.f32.xlu0 %v614
        %v627 = vpop.xlane.xlu0 %626
        %628 = vadd.xlane.f32.xlu0 %v615
        %v629 = vpop.xlane.xlu0 %628
        %630 = vadd.xlane.f32.xlu0 %v616
        %v631 = vpop.xlane.xlu0 %630
        %632 = vadd.xlane.f32.xlu0 %v617
        %v633 = vpop.xlane.xlu0 %632
        %v634 = vmul.f32 %v619, %v431
        %v635 = vmul.f32 %v621, %v431
        %v636 = vmul.f32 %v623, %v431
        %v637 = vmul.f32 %v625, %v431
        %v638 = vmul.f32 %v627, %v431
        %v639 = vmul.f32 %v629, %v431
        %v640 = vmul.f32 %v631, %v431
        %v641 = vmul.f32 %v633, %v431
        %v642 = vsub.f32 %v610, %v634
        %v643 = vsub.f32 %v611, %v635
        %v644 = vsub.f32 %v612, %v636
        %v645 = vsub.f32 %v613, %v637
        %v646 = vsub.f32 %v614, %v638
        %v647 = vsub.f32 %v615, %v639
        %v648 = vsub.f32 %v616, %v640
        %v649 = vsub.f32 %v617, %v641
        %v650 = vmul.f32 %v642, %v642
        %v651 = vmul.f32 %v643, %v643
        %v652 = vmul.f32 %v644, %v644
        %v653 = vmul.f32 %v645, %v645
        %v654 = vmul.f32 %v646, %v646
        %v655 = vmul.f32 %v647, %v647
        %v656 = vmul.f32 %v648, %v648
        %v657 = vmul.f32 %v649, %v649
        %658 = vadd.xlane.f32.xlu0 %v650
        %v659 = vpop.xlane.xlu0 %658
        %660 = vadd.xlane.f32.xlu0 %v651
        %v661 = vpop.xlane.xlu0 %660
        %662 = vadd.xlane.f32.xlu0 %v652
        %v663 = vpop.xlane.xlu0 %662
        %664 = vadd.xlane.f32.xlu0 %v653
        %v665 = vpop.xlane.xlu0 %664
        %666 = vadd.xlane.f32.xlu0 %v654
        %v667 = vpop.xlane.xlu0 %666
        %668 = vadd.xlane.f32.xlu0 %v655
        %v669 = vpop.xlane.xlu0 %668
        %670 = vadd.xlane.f32.xlu0 %v656
        %v671 = vpop.xlane.xlu0 %670
        %672 = vadd.xlane.f32.xlu0 %v657
        %v673 = vpop.xlane.xlu0 %672
        %v674 = vmul.f32 %v659, %v431
        %v675 = vmul.f32 %v661, %v431
        %v676 = vmul.f32 %v663, %v431
        %v677 = vmul.f32 %v665, %v431
        %v678 = vmul.f32 %v667, %v431
        %v679 = vmul.f32 %v669, %v431
        %v680 = vmul.f32 %v671, %v431
        %v681 = vmul.f32 %v673, %v431
        %v682 = vadd.f32 %v674, 1e-05
        %v683 = vadd.f32 %v675, 1e-05
        %v684 = vadd.f32 %v676, 1e-05
        %v685 = vadd.f32 %v677, 1e-05
        %v686 = vadd.f32 %v678, 1e-05
        %v687 = vadd.f32 %v679, 1e-05
        %v688 = vadd.f32 %v680, 1e-05
        %v689 = vadd.f32 %v681, 1e-05
        %v690 = vrsqrt.pop %v682
        %v691 = vmul.f32 %v690, %v682
        %v692 = vmul.f32 %v691, %v690
        %v693 = vmul.f32 0.5, %v692
        %v694 = vsub.f32 1.5, %v693
        %v695 = vmul.f32 %v690, %v694
        %vm696 = vweird.f32 %v682
        %vm697 = vweird.f32 %v690
        %vm698 = vmor %vm696, %vm697
        %v699 = vsel %vm698, %v690, %v695
        %v700 = vrsqrt.pop %v683
        %v701 = vmul.f32 %v700, %v683
        %v702 = vmul.f32 %v701, %v700
        %v703 = vmul.f32 0.5, %v702
        %v704 = vsub.f32 1.5, %v703
        %v705 = vmul.f32 %v700, %v704
        %vm706 = vweird.f32 %v683
        %vm707 = vweird.f32 %v700
        %vm708 = vmor %vm706, %vm707
        %v709 = vsel %vm708, %v700, %v705
        %v710 = vrsqrt.pop %v684
        %v711 = vmul.f32 %v710, %v684
        %v712 = vmul.f32 %v711, %v710
        %v713 = vmul.f32 0.5, %v712
        %v714 = vsub.f32 1.5, %v713
        %v715 = vmul.f32 %v710, %v714
        %vm716 = vweird.f32 %v684
        %vm717 = vweird.f32 %v710
        %vm718 = vmor %vm716, %vm717
        %v719 = vsel %vm718, %v710, %v715
        %v720 = vrsqrt.pop %v685
        %v721 = vmul.f32 %v720, %v685
        %v722 = vmul.f32 %v721, %v720
        %v723 = vmul.f32 0.5, %v722
        %v724 = vsub.f32 1.5, %v723
        %v725 = vmul.f32 %v720, %v724
        %vm726 = vweird.f32 %v685
        %vm727 = vweird.f32 %v720
        %vm728 = vmor %vm726, %vm727
        %v729 = vsel %vm728, %v720, %v725
        %v730 = vrsqrt.pop %v686
        %v731 = vmul.f32 %v730, %v686
        %v732 = vmul.f32 %v731, %v730
        %v733 = vmul.f32 0.5, %v732
        %v734 = vsub.f32 1.5, %v733
        %v735 = vmul.f32 %v730, %v734
        %vm736 = vweird.f32 %v686
        %vm737 = vweird.f32 %v730
        %vm738 = vmor %vm736, %vm737
        %v739 = vsel %vm738, %v730, %v735
        %v740 = vrsqrt.pop %v687
        %v741 = vmul.f32 %v740, %v687
        %v742 = vmul.f32 %v741, %v740
        %v743 = vmul.f32 0.5, %v742
        %v744 = vsub.f32 1.5, %v743
        %v745 = vmul.f32 %v740, %v744
        %vm746 = vweird.f32 %v687
        %vm747 = vweird.f32 %v740
        %vm748 = vmor %vm746, %vm747
        %v749 = vsel %vm748, %v740, %v745
        %v750 = vrsqrt.pop %v688
        %v751 = vmul.f32 %v750, %v688
        %v752 = vmul.f32 %v751, %v750
        %v753 = vmul.f32 0.5, %v752
        %v754 = vsub.f32 1.5, %v753
        %v755 = vmul.f32 %v750, %v754
        %vm756 = vweird.f32 %v688
        %vm757 = vweird.f32 %v750
        %vm758 = vmor %vm756, %vm757
        %v759 = vsel %vm758, %v750, %v755
        %v760 = vrsqrt.pop %v689
        %v761 = vmul.f32 %v760, %v689
        %v762 = vmul.f32 %v761, %v760
        %v763 = vmul.f32 0.5, %v762
        %v764 = vsub.f32 1.5, %v763
        %v765 = vmul.f32 %v760, %v764
        %vm766 = vweird.f32 %v689
        %vm767 = vweird.f32 %v760
        %vm768 = vmor %vm766, %vm767
        %v769 = vsel %vm768, %v760, %v765
        %v770 = vmul.f32 %v642, %v699
        %v771 = vmul.f32 %v643, %v709
        %v772 = vmul.f32 %v644, %v719
        %v773 = vmul.f32 %v645, %v729
        %v774 = vmul.f32 %v646, %v739
        %v775 = vmul.f32 %v647, %v749
        %v776 = vmul.f32 %v648, %v759
        %v777 = vmul.f32 %v649, %v769
        %v779 = vperm.slane %v354, 0
        %v781 = vmul.f32 %v770, %v779
        %v782 = vmul.f32 %v771, %v779
        %v783 = vmul.f32 %v772, %v779
        %v784 = vmul.f32 %v773, %v779
        %v785 = vmul.f32 %v774, %v779
        %v786 = vmul.f32 %v775, %v779
        %v787 = vmul.f32 %v776, %v779
        %v788 = vmul.f32 %v777, %v779
        %v790 = vperm.slane %v355, 0
        %v792 = vadd.f32 %v781, %v790
        %v793 = vadd.f32 %v782, %v790
        %v794 = vadd.f32 %v783, %v790
        %v795 = vadd.f32 %v784, %v790
        %v796 = vadd.f32 %v785, %v790
        %v797 = vadd.f32 %v786, %v790
        %v798 = vadd.f32 %v787, %v790
        %v799 = vadd.f32 %v788, %v790
        %v800 = vpack.c.bf16 %v793, %v792
        %v801 = vpack.c.bf16 %v795, %v794
        %v802 = vpack.c.bf16 %v797, %v796
        %v803 = vpack.c.bf16 %v799, %v798
        %v804 = vperm.slane %v353, 2
        %v805 = vadd.f32 %v582, %v804
        %v806 = vadd.f32 %v584, %v804
        %v807 = vadd.f32 %v587, %v804
        %v808 = vadd.f32 %v589, %v804
        %v809 = vadd.f32 %v592, %v804
        %v810 = vadd.f32 %v594, %v804
        %v811 = vadd.f32 %v597, %v804
        %v812 = vadd.f32 %v599, %v804
        %v813 = vmax.f32 %v805, 0.0
        %v814 = vmax.f32 %v806, 0.0
        %v815 = vmax.f32 %v807, 0.0
        %v816 = vmax.f32 %v808, 0.0
        %v817 = vmax.f32 %v809, 0.0
        %v818 = vmax.f32 %v810, 0.0
        %v819 = vmax.f32 %v811, 0.0
        %v820 = vmax.f32 %v812, 0.0
        %821 = vadd.xlane.f32.xlu0 %v813
        %v822 = vpop.xlane.xlu0 %821
        %823 = vadd.xlane.f32.xlu0 %v814
        %v824 = vpop.xlane.xlu0 %823
        %825 = vadd.xlane.f32.xlu0 %v815
        %v826 = vpop.xlane.xlu0 %825
        %827 = vadd.xlane.f32.xlu0 %v816
        %v828 = vpop.xlane.xlu0 %827
        %829 = vadd.xlane.f32.xlu0 %v817
        %v830 = vpop.xlane.xlu0 %829
        %831 = vadd.xlane.f32.xlu0 %v818
        %v832 = vpop.xlane.xlu0 %831
        %833 = vadd.xlane.f32.xlu0 %v819
        %v834 = vpop.xlane.xlu0 %833
        %835 = vadd.xlane.f32.xlu0 %v820
        %v836 = vpop.xlane.xlu0 %835
        %v837 = vmul.f32 %v822, %v431
        %v838 = vmul.f32 %v824, %v431
        %v839 = vmul.f32 %v826, %v431
        %v840 = vmul.f32 %v828, %v431
        %v841 = vmul.f32 %v830, %v431
        %v842 = vmul.f32 %v832, %v431
        %v843 = vmul.f32 %v834, %v431
        %v844 = vmul.f32 %v836, %v431
        %v845 = vsub.f32 %v813, %v837
        %v846 = vsub.f32 %v814, %v838
        %v847 = vsub.f32 %v815, %v839
        %v848 = vsub.f32 %v816, %v840
        %v849 = vsub.f32 %v817, %v841
        %v850 = vsub.f32 %v818, %v842
        %v851 = vsub.f32 %v819, %v843
        %v852 = vsub.f32 %v820, %v844
        %v853 = vmul.f32 %v845, %v845
        %v854 = vmul.f32 %v846, %v846
        %v855 = vmul.f32 %v847, %v847
        %v856 = vmul.f32 %v848, %v848
        %v857 = vmul.f32 %v849, %v849
        %v858 = vmul.f32 %v850, %v850
        %v859 = vmul.f32 %v851, %v851
        %v860 = vmul.f32 %v852, %v852
        %861 = vadd.xlane.f32.xlu0 %v853
        %v862 = vpop.xlane.xlu0 %861
        %863 = vadd.xlane.f32.xlu0 %v854
        %v864 = vpop.xlane.xlu0 %863
        %865 = vadd.xlane.f32.xlu0 %v855
        %v866 = vpop.xlane.xlu0 %865
        %867 = vadd.xlane.f32.xlu0 %v856
        %v868 = vpop.xlane.xlu0 %867
        %869 = vadd.xlane.f32.xlu0 %v857
        %v870 = vpop.xlane.xlu0 %869
        %871 = vadd.xlane.f32.xlu0 %v858
        %v872 = vpop.xlane.xlu0 %871
        %873 = vadd.xlane.f32.xlu0 %v859
        %v874 = vpop.xlane.xlu0 %873
        %875 = vadd.xlane.f32.xlu0 %v860
        %v876 = vpop.xlane.xlu0 %875
        %v877 = vmul.f32 %v862, %v431
        %v878 = vmul.f32 %v864, %v431
        %v879 = vmul.f32 %v866, %v431
        %v880 = vmul.f32 %v868, %v431
        %v881 = vmul.f32 %v870, %v431
        %v882 = vmul.f32 %v872, %v431
        %v883 = vmul.f32 %v874, %v431
        %v884 = vmul.f32 %v876, %v431
        %v885 = vadd.f32 %v877, 1e-05
        %v886 = vadd.f32 %v878, 1e-05
        %v887 = vadd.f32 %v879, 1e-05
        %v888 = vadd.f32 %v880, 1e-05
        %v889 = vadd.f32 %v881, 1e-05
        %v890 = vadd.f32 %v882, 1e-05
        %v891 = vadd.f32 %v883, 1e-05
        %v892 = vadd.f32 %v884, 1e-05
        %v893 = vrsqrt.pop %v885
        %v894 = vmul.f32 %v893, %v885
        %v895 = vmul.f32 %v894, %v893
        %v896 = vmul.f32 0.5, %v895
        %v897 = vsub.f32 1.5, %v896
        %v898 = vmul.f32 %v893, %v897
        %vm899 = vweird.f32 %v885
        %vm900 = vweird.f32 %v893
        %vm901 = vmor %vm899, %vm900
        %v902 = vsel %vm901, %v893, %v898
        %v903 = vrsqrt.pop %v886
        %v904 = vmul.f32 %v903, %v886
        %v905 = vmul.f32 %v904, %v903
        %v906 = vmul.f32 0.5, %v905
        %v907 = vsub.f32 1.5, %v906
        %v908 = vmul.f32 %v903, %v907
        %vm909 = vweird.f32 %v886
        %vm910 = vweird.f32 %v903
        %vm911 = vmor %vm909, %vm910
        %v912 = vsel %vm911, %v903, %v908
        %v913 = vrsqrt.pop %v887
        %v914 = vmul.f32 %v913, %v887
        %v915 = vmul.f32 %v914, %v913
        %v916 = vmul.f32 0.5, %v915
        %v917 = vsub.f32 1.5, %v916
        %v918 = vmul.f32 %v913, %v917
        %vm919 = vweird.f32 %v887
        %vm920 = vweird.f32 %v913
        %vm921 = vmor %vm919, %vm920
        %v922 = vsel %vm921, %v913, %v918
        %v923 = vrsqrt.pop %v888
        %v924 = vmul.f32 %v923, %v888
        %v925 = vmul.f32 %v924, %v923
        %v926 = vmul.f32 0.5, %v925
        %v927 = vsub.f32 1.5, %v926
        %v928 = vmul.f32 %v923, %v927
        %vm929 = vweird.f32 %v888
        %vm930 = vweird.f32 %v923
        %vm931 = vmor %vm929, %vm930
        %v932 = vsel %vm931, %v923, %v928
        %v933 = vrsqrt.pop %v889
        %v934 = vmul.f32 %v933, %v889
        %v935 = vmul.f32 %v934, %v933
        %v936 = vmul.f32 0.5, %v935
        %v937 = vsub.f32 1.5, %v936
        %v938 = vmul.f32 %v933, %v937
        %vm939 = vweird.f32 %v889
        %vm940 = vweird.f32 %v933
        %vm941 = vmor %vm939, %vm940
        %v942 = vsel %vm941, %v933, %v938
        %v943 = vrsqrt.pop %v890
        %v944 = vmul.f32 %v943, %v890
        %v945 = vmul.f32 %v944, %v943
        %v946 = vmul.f32 0.5, %v945
        %v947 = vsub.f32 1.5, %v946
        %v948 = vmul.f32 %v943, %v947
        %vm949 = vweird.f32 %v890
        %vm950 = vweird.f32 %v943
        %vm951 = vmor %vm949, %vm950
        %v952 = vsel %vm951, %v943, %v948
        %v953 = vrsqrt.pop %v891
        %v954 = vmul.f32 %v953, %v891
        %v955 = vmul.f32 %v954, %v953
        %v956 = vmul.f32 0.5, %v955
        %v957 = vsub.f32 1.5, %v956
        %v958 = vmul.f32 %v953, %v957
        %vm959 = vweird.f32 %v891
        %vm960 = vweird.f32 %v953
        %vm961 = vmor %vm959, %vm960
        %v962 = vsel %vm961, %v953, %v958
        %v963 = vrsqrt.pop %v892
        %v964 = vmul.f32 %v963, %v892
        %v965 = vmul.f32 %v964, %v963
        %v966 = vmul.f32 0.5, %v965
        %v967 = vsub.f32 1.5, %v966
        %v968 = vmul.f32 %v963, %v967
        %vm969 = vweird.f32 %v892
        %vm970 = vweird.f32 %v963
        %vm971 = vmor %vm969, %vm970
        %v972 = vsel %vm971, %v963, %v968
        %v973 = vmul.f32 %v845, %v902
        %v974 = vmul.f32 %v846, %v912
        %v975 = vmul.f32 %v847, %v922
        %v976 = vmul.f32 %v848, %v932
        %v977 = vmul.f32 %v849, %v942
        %v978 = vmul.f32 %v850, %v952
        %v979 = vmul.f32 %v851, %v962
        %v980 = vmul.f32 %v852, %v972
        %v981 = vmul.f32 %v973, %v779
        %v982 = vmul.f32 %v974, %v779
        %v983 = vmul.f32 %v975, %v779
        %v984 = vmul.f32 %v976, %v779
        %v985 = vmul.f32 %v977, %v779
        %v986 = vmul.f32 %v978, %v779
        %v987 = vmul.f32 %v979, %v779
        %v988 = vmul.f32 %v980, %v779
        %v989 = vadd.f32 %v981, %v790
        %v990 = vadd.f32 %v982, %v790
        %v991 = vadd.f32 %v983, %v790
        %v992 = vadd.f32 %v984, %v790
        %v993 = vadd.f32 %v985, %v790
        %v994 = vadd.f32 %v986, %v790
        %v995 = vadd.f32 %v987, %v790
        %v996 = vadd.f32 %v988, %v790
        %v997 = vpack.c.bf16 %v990, %v989
        %v998 = vpack.c.bf16 %v992, %v991
        %v999 = vpack.c.bf16 %v994, %v993
        %v1000 = vpack.c.bf16 %v996, %v995
        %v1001 = vpack.c.bf16 %v453, %v453
        %1002 = vmatpush.bf16.xpose.msra.mxu0 0
        %1003 = vmatpush.bf16.xpose.msra.mxu0 0
        %1004 = vmatpush.bf16.xpose.msra.mxu0 0
        %1005 = vmatpush.bf16.xpose.msra.mxu0 0
        %1006 = vmatpush.bf16.xpose.msra.mxu0 %v803
        %1007 = vmatpush.bf16.xpose.msra.mxu0 %v802
        %1008 = vmatpush.bf16.xpose.msra.mxu0 %v801
        %1009 = vmatpush.bf16.xpose.msra.mxu0 %v800
        %1010 = vmatmul.bf16.gmra.mxu0 %v1001
        %v1011 = vpop.f32.mrf.mxu0
        %v1012 = vadd.f32 0.0, %v1011
        %v1013 = vpop.f32.mrf.mxu0
        %1014 = vdwg.mxu0
        %v1015 = vmul.f32 %v453, %v482
        %v1016 = vsel %vm421, %v1015, 0.0
        %1017 = vadd.xlane.f32.xlu0 %v1016
        %v1018 = vpop.xlane.xlu0 %1017
        %vm1019 = vcmask 516096
        %v1020 = vsel %vm1019, %v1012, -inf
        %1021 = vmax.xlane.f32.xlu0 %v1020
        %v1022 = vpop.xlane.xlu0 %1021
        %v1023 = vmax.f32 %v1022, %v1018
        %v1024 = vsub.f32 %v1012, %v1023
        %v1025 = vmul.f32 %v1024, 1.442695
        %v1026 = vpow.pop %v1025
        %v1027 = vsub.f32 %v1018, %v1023
        %v1028 = vmul.f32 %v1027, 1.442695
        %v1029 = vpow.pop %v1028
        %v1030 = vsel %vm1019, %v1026, 0.0
        %1031 = vadd.xlane.f32.xlu0 %v1030
        %v1032 = vpop.xlane.xlu0 %1031
        %v1033 = vadd.f32 %v1029, %v1032
        %v1034 = vrcp.pop %v1033
        %v1035 = vmul.f32 %v1033, %v1034
        %v1036 = vsub.f32 1.0, %v1035
        %v1037 = vmul.f32 %v1034, %v1036
        %v1038 = vadd.f32 %v1034, %v1037
        %vm1039 = vweird.f32 %v1033
        %vm1040 = vweird.f32 %v1034
        %vm1041 = vmor %vm1039, %vm1040
        %v1042 = vsel %vm1041, %v1034, %v1038
        %v1043 = vand.u32 2147483647, %v1033
        %vm1044 = vcmp.eq.f32.partialorder %v1043, 8.507059e+37
        %v1045 = vand.u32 %v1033, 2147483648
        %v1046 = vor.u32 1.1754944e-38, %v1045
        %v1047 = vsel %vm1044, %v1046, %v1042
        %v1048 = vmul.f32 1.0, %v1047
        %v1049 = vmul.f32 %v1026, %v1048
        %v1050 = vmul.f32 %v1029, %v1048
        %v1051 = vmul.f32 %v1050, %v510
        %v1052 = vpack.c.bf16 %v1049, %v1049
        %vm1053 = vcmask 523264
        %v1055 = vsel %vm1053, %v1052, 0
        %1057 = vmatpush.bf16.msra.mxu0 0
        %1058 = vmatpush.bf16.msra.mxu0 0
        %1059 = vmatpush.bf16.msra.mxu0 0
        %1060 = vmatpush.bf16.msra.mxu0 0
        %1061 = vmatpush.bf16.msra.mxu0 %v1000
        %1062 = vmatpush.bf16.msra.mxu0 %v999
        %1063 = vmatpush.bf16.msra.mxu0 %v998
        %1064 = vmatpush.bf16.msra.mxu0 %v997
        %1065 = vmatmul.bf16.gmra.mxu0 %v1055
        %v1066 = vpop.f32.mrf.mxu0
        %v1067 = vadd.f32 0.0, %v1066
        %v1068 = vpop.f32.mrf.mxu0
        %1069 = vdwg.mxu0
        %v1070 = vadd.f32 %v1051, %v1067
        %v1071 = vpack.c.bf16 %v1070, %v1070
        %v1072 = vld [vmem:[%s6] sm:$0xf]
        %v1073 = vld [vmem:[%s6 + $0x4] sm:$0xf]
        %v1074 = vld [vmem:[%s6 + $0x8] sm:$0xf]
        %v1075 = vld [vmem:[%s6 + $0xc] sm:$0xf]
        %v1076 = vld [vmem:[%s6 + $0x10] sm:$0xf]
        %v1077 = vld [vmem:[%s6 + $0x14] sm:$0xf]
        %v1078 = vld [vmem:[%s6 + $0x18] sm:$0xf]
        %v1079 = vld [vmem:[%s6 + $0x1c] sm:$0xf]
        %v1080 = vld [vmem:[%s6 + $0x20] sm:$0xf]
        %v1081 = vld [vmem:[%s6 + $0x24] sm:$0xf]
        %v1082 = vld [vmem:[%s6 + $0x28] sm:$0xf]
        %v1083 = vld [vmem:[%s6 + $0x2c] sm:$0xf]
        %v1084 = vld [vmem:[%s6 + $0x30] sm:$0xf]
        %v1085 = vld [vmem:[%s6 + $0x34] sm:$0xf]
        %v1086 = vld [vmem:[%s6 + $0x38] sm:$0xf]
        %v1087 = vld [vmem:[%s6 + $0x3c] sm:$0xf]
        %v1104 = vunpack.c.l.b16 %v1072
        %v1105 = vunpack.c.l.b16 %v1073
        %v1106 = vunpack.c.l.b16 %v1074
        %v1107 = vunpack.c.l.b16 %v1075
        %v1108 = vunpack.c.l.b16 %v1076
        %v1109 = vunpack.c.l.b16 %v1077
        %v1110 = vunpack.c.l.b16 %v1078
        %v1111 = vunpack.c.l.b16 %v1079
        %v1112 = vunpack.c.l.b16 %v1080
        %v1113 = vunpack.c.l.b16 %v1081
        %v1114 = vunpack.c.l.b16 %v1082
        %v1115 = vunpack.c.l.b16 %v1083
        %v1116 = vunpack.c.l.b16 %v1084
        %v1117 = vunpack.c.l.b16 %v1085
        %v1118 = vunpack.c.l.b16 %v1086
        %v1119 = vunpack.c.l.b16 %v1087
        %v1120 = vpack.c.b16 %v1105, %v1104
        %v1121 = vpack.c.b16 %v1107, %v1106
        %v1122 = vpack.c.b16 %v1109, %v1108
        %v1123 = vpack.c.b16 %v1111, %v1110
        %v1124 = vpack.c.b16 %v1113, %v1112
        %v1125 = vpack.c.b16 %v1115, %v1114
        %v1126 = vpack.c.b16 %v1117, %v1116
        %v1127 = vpack.c.b16 %v1119, %v1118
        %1136 = vmatpush.bf16.msra.mxu0 %v1127
        %1137 = vmatpush.bf16.msra.mxu0 %v1126
        %1138 = vmatpush.bf16.msra.mxu0 %v1125
        %1139 = vmatpush.bf16.msra.mxu0 %v1124
        %1140 = vmatpush.bf16.msra.mxu0 %v1123
        %1141 = vmatpush.bf16.msra.mxu0 %v1122
        %1142 = vmatpush.bf16.msra.mxu0 %v1121
        %1143 = vmatpush.bf16.msra.mxu0 %v1120
        %1144 = vmatmul.bf16.gmra.mxu0 %v1071
        %v1145 = vpop.f32.mrf.mxu0
        %v1146 = vadd.f32 0.0, %v1145
        %v1147 = vpop.f32.mrf.mxu0
        %1148 = vdwg.mxu0
        %vm1149 = vcmask 122880
        %1150 = vst.msk [vmem:[%s322] sm:$0x1] %vm1149, %v1146
        %1151 = vst.msk [vmem:[%s342] sm:$0x1] %vm1019, %v1049
        %s1152 = sand.u32 %s193, 1
        %s1153 = scalar_lea.sflag [#allocation3], %s1152
        %s1154 = sand.u32 %s193, 1
        %s1155 = scalar_lea.vmem [#allocation2], %s1154
        %p1156 = scmp.lt.s32.totalorder %s23, 1
        %s1157 = scalar_select %p1156, %s23, 1
        %s1158 = scalar_lea.vmem %s8, %s1157
        // Predicated region
        $region49: #{model_forward.2} parent=47 // pred_check
          %p1159 = pneg %p203
        $region50: #{model_forward.2} parent=47 // pred_check_branch
          %1161 = sbr.rel (%p1159) target = $region52
        $region51: #{model_forward.2} parent=47 // pred_region
          %1163 = vsyncadd %s1153, 0
          %s1164 = scalar_lea.hbm %s7, %s23
          %s1166 = sshll.u32 %s1155, 4
          %s1167 = int_to_ptr.vmem [resolvable:$true] %s1166
          %s1168 = sshll.u32 %s1164, 4
          %s1169 = int_to_ptr.hbm [resolvable:$true] %s1168
          %1171 = dma.vmem_to_hbm [thread:$0]  %s1167, 16, %s1169, %s1153
        $region52: #{model_forward.2} parent=47 // pred_fallthru
          _
        // Predicated region
        $region53: #{model_forward.2} parent=47 // pred_check
          %p1172 = pneg %p229
        $region54: #{model_forward.2} parent=47 // pred_check_branch
          %1174 = sbr.rel (%p1172) target = $region56
        $region55: #{model_forward.2} parent=47 // pred_region
          _
        $region56: #{model_forward.2} parent=47 // pred_fallthru
          _
      $region48: #{model_forward.2} parent=5 // pred_fallthru
        _
      %p1175 = scmp.le.s32.totalorder 2, %s18
      // Predicated region
      $region57: #{model_forward.2} parent=5 // pred_check
        %p1176 = pneg %p1175
      $region58: #{model_forward.2} parent=5 // pred_check_branch
        %1178 = sbr.rel (%p1176) target = $region60
      $region59: #{model_forward.2} parent=5 // pred_region
        %s1179 = ssub.s32 %s18, 2
        // Predicated region
        $region61: #{model_forward.2} parent=59 // pred_check
          %p1180 = pneg %p209
        $region62: #{model_forward.2} parent=59 // pred_check_branch
          %1182 = sbr.rel (%p1180) target = $region64
        $region63: #{model_forward.2} parent=59 // pred_region
          %s1183 = sand.u32 %s194, 1
          %s1184 = scalar_lea.sflag [#allocation3], %s1183
          %s1185 = sand.u32 %s194, 1
          %s1186 = scalar_lea.vmem [#allocation2], %s1185
          %1188 = dma.done %s1184, 16
        $region64: #{model_forward.2} parent=59 // pred_fallthru
          _
        // Predicated region
        $region65: #{model_forward.2} parent=59 // pred_check
          %p1189 = pneg %p235
        $region66: #{model_forward.2} parent=59 // pred_check_branch
          %1191 = sbr.rel (%p1189) target = $region68
        $region67: #{model_forward.2} parent=59 // pred_region
          %p1192 = scmp.lt.s32.totalorder %s24, 1
          %s1193 = scalar_select %p1192, %s24, 1
          %s1194 = scalar_lea.vmem %s8, %s1193
        $region68: #{model_forward.2} parent=59 // pred_fallthru
          _
      $region60: #{model_forward.2} parent=5 // pred_fallthru
        _
    $region6: #{model_forward.2} parent=1 // loop_footer
      %s22 = sadd.s32 1, %s18
    $region7: #{model_forward.2} parent=1 // loop_footer_branch
      %17 = sbr.rel target = $region3
    $region8: #{model_forward.2} parent=1 // loop_exit
      _
    %1195 = vsyncpa [#allocation3], 1
    %s1196 = scalar_lea.sflag [#allocation3], 1
    %1197 = vsyncpa %s1196, 1

// kernel: model_forward.3
$region0: #{model_forward.3}
  #allocation0 [shape = 'u32[]', space=smem, size = 0x4, offset = 0x4, fixed_abs, tag = 'smem constant byte address 0x4 - core index']
  #allocation1 [shape = 'u32[72,128]{1,0:T(1,128)}', space=vmem, size = 0x9000, scoped, tag = 'internal scratch']
  %s0 = inlined_call_operand.vmem [shape: bf16[2,16,32], index: 0, kind: input, shape index: {}]
  %s1 = inlined_call_operand.vmem [shape: bf16[2,1,32], index: 1, kind: input, shape index: {}]
  %s2 = inlined_call_operand.vmem [shape: f32[2,3,128], index: 2, kind: input, shape index: {}]
  %s3 = inlined_call_operand.vmem [shape: bf16[32,384], index: 3, kind: input, shape index: {}]
  %s4 = inlined_call_operand.vmem [shape: f32[1,128], index: 4, kind: input, shape index: {}]
  %s5 = inlined_call_operand.vmem [shape: f32[1,128], index: 5, kind: input, shape index: {}]
  %s6 = inlined_call_operand.vmem [shape: bf16[128,32], index: 6, kind: input, shape index: {}]
  %s7 = inlined_call_operand.hbm [shape: f32[2,1,32], index: 7, kind: output, shape index: {0}]
  %s8 = inlined_call_operand.vmem [shape: f32[2,1,16], index: 8, kind: output, shape index: {1}]
  %9 = xla_tuple %s7, %s8
  %s10 = sld [smem:[#allocation0]]
  $region69: #{model_forward.3} parent=0
    _
  %s12 = ssub.s32 1, %s10
  %s13 = scalar_select 0, %s12, %s10
  $region1: #{model_forward.3} parent=0
    #allocation2 [shape = 'u8[1024]{0}', space=vmem, size = 0x400, scoped, tag = 'output window, operand 0']
    #allocation3 [shape = 's32[2]{0}', space=sflag, size = 0x8, scoped, tag = 'scoped memory for model_forward.3']
    %14 = vsyncpa [#allocation3], 0
    %s15 = scalar_lea.sflag [#allocation3], 1
    %16 = vsyncpa %s15, 0
    loop: start=0, step=1, limit=4
    $region2: #{model_forward.3} parent=1 // loop_pre_header
      _
    $region3: #{model_forward.3} parent=1 // loop_header
      %s18 = sphi 0, %s22
      %p19 = scmp.ge.s32.totalorder %s18, 4
      %s28 = sphi 0, %s30
      %s31 = sphi 0, %s28
      %s32 = sphi 0, %s31
      %s48 = sphi 0, %s32
      %s54 = sphi 0, %s56
      %s57 = sphi 0, %s54
      %s58 = sphi 0, %s57
      %s74 = sphi 0, %s58
      %s80 = sphi 0, %s82
      %s83 = sphi 0, %s80
      %s84 = sphi 0, %s83
      %s100 = sphi 0, %s84
      %s104 = sphi 0, %s104
      %s106 = sphi 0, %s104
      %s107 = sphi 0, %s106
      %s121 = sphi 0, %s107
      %s125 = sphi 0, %s125
      %s127 = sphi 0, %s125
      %s128 = sphi 0, %s127
      %s142 = sphi 0, %s128
      %s146 = sphi 0, %s146
      %s148 = sphi 0, %s146
      %s149 = sphi 0, %s148
      %s163 = sphi 0, %s149
      %s167 = sphi 0, %s167
      %s169 = sphi 0, %s167
      %s170 = sphi 0, %s169
      %s184 = sphi 0, %s170
      %s190 = sphi 0, %s192
      %s193 = sphi 0, %s190
      %s194 = sphi 0, %s193
      %s210 = sphi 0, %s194
      %s216 = sphi 0, %s218
      %s219 = sphi 0, %s216
      %s220 = sphi 0, %s219
      %s236 = sphi 0, %s220
    $region4: #{model_forward.3} parent=1 // loop_header_branch
      %21 = sbr.rel (%p19) target = $region8
    $region5: #{model_forward.3} parent=1 // loop_body
      %s23 = ssub.s32 %s18, 1
      %s24 = ssub.s32 %s18, 2
      %s25 = sadd.s32 %s18, 1
      %s26 = ssub.s32 %s18, %s25
      %p27 = scmp.eq.s32.totalorder %s26, 0
      %s29 = sadd.s32 %s28, 1
      %s30 = scalar_select %p27, %s28, %s29
      %p33 = pneg %p27
      %p34 = scmp.eq.s32.totalorder %s18, 1
      %p35 = por %p33, %p34
      %p36 = scmp.ne.s32.totalorder %s28, %s31
      %p37 = scmp.eq.s32.totalorder %s18, 0
      %p38 = por %p36, %p37
      %p39 = scmp.ne.s32.totalorder %s28, %s31
      %p40 = scmp.eq.s32.totalorder %s23, 1
      %p41 = por %p39, %p40
      %p42 = scmp.ne.s32.totalorder %s31, %s32
      %p43 = scmp.eq.s32.totalorder %s23, 0
      %p44 = por %p42, %p43
      %p45 = scmp.ne.s32.totalorder %s31, %s32
      %p46 = scmp.eq.s32.totalorder %s24, 1
      %p47 = por %p45, %p46
      %p49 = scmp.ne.s32.totalorder %s32, %s48
      %p50 = scmp.eq.s32.totalorder %s24, 0
      %p51 = por %p49, %p50
      %s52 = ssub.s32 %s18, %s25
      %p53 = scmp.eq.s32.totalorder %s52, 0
      %s55 = sadd.s32 %s54, 1
      %s56 = scalar_select %p53, %s54, %s55
      %p59 = pneg %p53
      %p60 = scmp.eq.s32.totalorder %s18, 1
      %p61 = por %p59, %p60
      %p62 = scmp.ne.s32.totalorder %s54, %s57
      %p63 = scmp.eq.s32.totalorder %s18, 0
      %p64 = por %p62, %p63
      %p65 = scmp.ne.s32.totalorder %s54, %s57
      %p66 = scmp.eq.s32.totalorder %s23, 1
      %p67 = por %p65, %p66
      %p68 = scmp.ne.s32.totalorder %s57, %s58
      %p69 = scmp.eq.s32.totalorder %s23, 0
      %p70 = por %p68, %p69
      %p71 = scmp.ne.s32.totalorder %s57, %s58
      %p72 = scmp.eq.s32.totalorder %s24, 1
      %p73 = por %p71, %p72
      %p75 = scmp.ne.s32.totalorder %s58, %s74
      %p76 = scmp.eq.s32.totalorder %s24, 0
      %p77 = por %p75, %p76
      %s78 = ssub.s32 %s18, %s25
      %p79 = scmp.eq.s32.totalorder %s78, 0
      %s81 = sadd.s32 %s80, 1
      %s82 = scalar_select %p79, %s80, %s81
      %p85 = pneg %p79
      %p86 = scmp.eq.s32.totalorder %s18, 1
      %p87 = por %p85, %p86
      %p88 = scmp.ne.s32.totalorder %s80, %s83
      %p89 = scmp.eq.s32.totalorder %s18, 0
      %p90 = por %p88, %p89
      %p91 = scmp.ne.s32.totalorder %s80, %s83
      %p92 = scmp.eq.s32.totalorder %s23, 1
      %p93 = por %p91, %p92
      %p94 = scmp.ne.s32.totalorder %s83, %s84
      %p95 = scmp.eq.s32.totalorder %s23, 0
      %p96 = por %p94, %p95
      %p97 = scmp.ne.s32.totalorder %s83, %s84
      %p98 = scmp.eq.s32.totalorder %s24, 1
      %p99 = por %p97, %p98
      %p101 = scmp.ne.s32.totalorder %s84, %s100
      %p102 = scmp.eq.s32.totalorder %s24, 0
      %p103 = por %p101, %p102
      %s105 = sadd.s32 %s104, 1
      %p108 = scmp.eq.s32.totalorder %s18, 1
      %p109 = scmp.ne.s32.totalorder %s104, %s106
      %p110 = scmp.eq.s32.totalorder %s18, 0
      %p111 = por %p109, %p110
      %p112 = scmp.ne.s32.totalorder %s104, %s106
      %p113 = scmp.eq.s32.totalorder %s23, 1
      %p114 = por %p112, %p113
      %p115 = scmp.ne.s32.totalorder %s106, %s107
      %p116 = scmp.eq.s32.totalorder %s23, 0
      %p117 = por %p115, %p116
      %p118 = scmp.ne.s32.totalorder %s106, %s107
      %p119 = scmp.eq.s32.totalorder %s24, 1
      %p120 = por %p118, %p119
      %p122 = scmp.ne.s32.totalorder %s107, %s121
      %p123 = scmp.eq.s32.totalorder %s24, 0
      %p124 = por %p122, %p123
      %s126 = sadd.s32 %s125, 1
      %p129 = scmp.eq.s32.totalorder %s18, 1
      %p130 = scmp.ne.s32.totalorder %s125, %s127
      %p131 = scmp.eq.s32.totalorder %s18, 0
      %p132 = por %p130, %p131
      %p133 = scmp.ne.s32.totalorder %s125, %s127
      %p134 = scmp.eq.s32.totalorder %s23, 1
      %p135 = por %p133, %p134
      %p136 = scmp.ne.s32.totalorder %s127, %s128
      %p137 = scmp.eq.s32.totalorder %s23, 0
      %p138 = por %p136, %p137
      %p139 = scmp.ne.s32.totalorder %s127, %s128
      %p140 = scmp.eq.s32.totalorder %s24, 1
      %p141 = por %p139, %p140
      %p143 = scmp.ne.s32.totalorder %s128, %s142
      %p144 = scmp.eq.s32.totalorder %s24, 0
      %p145 = por %p143, %p144
      %s147 = sadd.s32 %s146, 1
      %p150 = scmp.eq.s32.totalorder %s18, 1
      %p151 = scmp.ne.s32.totalorder %s146, %s148
      %p152 = scmp.eq.s32.totalorder %s18, 0
      %p153 = por %p151, %p152
      %p154 = scmp.ne.s32.totalorder %s146, %s148
      %p155 = scmp.eq.s32.totalorder %s23, 1
      %p156 = por %p154, %p155
      %p157 = scmp.ne.s32.totalorder %s148, %s149
      %p158 = scmp.eq.s32.totalorder %s23, 0
      %p159 = por %p157, %p158
      %p160 = scmp.ne.s32.totalorder %s148, %s149
      %p161 = scmp.eq.s32.totalorder %s24, 1
      %p162 = por %p160, %p161
      %p164 = scmp.ne.s32.totalorder %s149, %s163
      %p165 = scmp.eq.s32.totalorder %s24, 0
      %p166 = por %p164, %p165
      %s168 = sadd.s32 %s167, 1
      %p171 = scmp.eq.s32.totalorder %s18, 1
      %p172 = scmp.ne.s32.totalorder %s167, %s169
      %p173 = scmp.eq.s32.totalorder %s18, 0
      %p174 = por %p172, %p173
      %p175 = scmp.ne.s32.totalorder %s167, %s169
      %p176 = scmp.eq.s32.totalorder %s23, 1
      %p177 = por %p175, %p176
      %p178 = scmp.ne.s32.totalorder %s169, %s170
      %p179 = scmp.eq.s32.totalorder %s23, 0
      %p180 = por %p178, %p179
      %p181 = scmp.ne.s32.totalorder %s169, %s170
      %p182 = scmp.eq.s32.totalorder %s24, 1
      %p183 = por %p181, %p182
      %p185 = scmp.ne.s32.totalorder %s170, %s184
      %p186 = scmp.eq.s32.totalorder %s24, 0
      %p187 = por %p185, %p186
      %s188 = ssub.s32 %s18, %s25
      %p189 = scmp.eq.s32.totalorder %s188, 0
      %s191 = sadd.s32 %s190, 1
      %s192 = scalar_select %p189, %s190, %s191
      %p195 = pneg %p189
      %p196 = scmp.eq.s32.totalorder %s18, 1
      %p197 = por %p195, %p196
      %p198 = scmp.ne.s32.totalorder %s190, %s193
      %p199 = scmp.eq.s32.totalorder %s18, 0
      %p200 = por %p198, %p199
      %p201 = scmp.ne.s32.totalorder %s190, %s193
      %p202 = scmp.eq.s32.totalorder %s23, 1
      %p203 = por %p201, %p202
      %p204 = scmp.ne.s32.totalorder %s193, %s194
      %p205 = scmp.eq.s32.totalorder %s23, 0
      %p206 = por %p204, %p205
      %p207 = scmp.ne.s32.totalorder %s193, %s194
      %p208 = scmp.eq.s32.totalorder %s24, 1
      %p209 = por %p207, %p208
      %p211 = scmp.ne.s32.totalorder %s194, %s210
      %p212 = scmp.eq.s32.totalorder %s24, 0
      %p213 = por %p211, %p212
      %s214 = ssub.s32 %s18, %s25
      %p215 = scmp.eq.s32.totalorder %s214, 0
      %s217 = sadd.s32 %s216, 1
      %s218 = scalar_select %p215, %s216, %s217
      %p221 = pneg %p215
      %p222 = scmp.eq.s32.totalorder %s18, 1
      %p223 = por %p221, %p222
      %p224 = scmp.ne.s32.totalorder %s216, %s219
      %p225 = scmp.eq.s32.totalorder %s18, 0
      %p226 = por %p224, %p225
      %p227 = scmp.ne.s32.totalorder %s216, %s219
      %p228 = scmp.eq.s32.totalorder %s23, 1
      %p229 = por %p227, %p228
      %p230 = scmp.ne.s32.totalorder %s219, %s220
      %p231 = scmp.eq.s32.totalorder %s23, 0
      %p232 = por %p230, %p231
      %p233 = scmp.ne.s32.totalorder %s219, %s220
      %p234 = scmp.eq.s32.totalorder %s24, 1
      %p235 = por %p233, %p234
      %p237 = scmp.ne.s32.totalorder %s220, %s236
      %p238 = scmp.eq.s32.totalorder %s24, 0
      %p239 = por %p237, %p238
      %p240 = scmp.le.s32.totalorder 1, %s18
      %p241 = scmp.lt.s32.totalorder %s18, 3
      %p242 = pnand %p240, %p241
      %p243 = pneg %p242
      // Predicated region
      $region9: #{model_forward.3} parent=5 // pred_check
        _
      $region10: #{model_forward.3} parent=5 // pred_check_branch
        %245 = sbr.rel (%p242) target = $region12
      $region11: #{model_forward.3} parent=5 // pred_region
        %s246 = ssub.s32 %s18, 1
        // Predicated region
        $region13: #{model_forward.3} parent=11 // pred_check
          %p247 = pneg %p117
        $region14: #{model_forward.3} parent=11 // pred_check_branch
          %249 = sbr.rel (%p247) target = $region16
        $region15: #{model_forward.3} parent=11 // pred_region
          _
        $region16: #{model_forward.3} parent=11 // pred_fallthru
          _
        // Predicated region
        $region17: #{model_forward.3} parent=11 // pred_check
          %p250 = pneg %p138
        $region18: #{model_forward.3} parent=11 // pred_check_branch
          %252 = sbr.rel (%p250) target = $region20
        $region19: #{model_forward.3} parent=11 // pred_region
          _
        $region20: #{model_forward.3} parent=11 // pred_fallthru
          _
        // Predicated region
        $region21: #{model_forward.3} parent=11 // pred_check
          %p253 = pneg %p159
        $region22: #{model_forward.3} parent=11 // pred_check_branch
          %255 = sbr.rel (%p253) target = $region24
        $region23: #{model_forward.3} parent=11 // pred_region
          _
        $region24: #{model_forward.3} parent=11 // pred_fallthru
          _
        // Predicated region
        $region25: #{model_forward.3} parent=11 // pred_check
          %p256 = pneg %p180
        $region26: #{model_forward.3} parent=11 // pred_check_branch
          %258 = sbr.rel (%p256) target = $region28
        $region27: #{model_forward.3} parent=11 // pred_region
          _
        $region28: #{model_forward.3} parent=11 // pred_fallthru
          _
      $region12: #{model_forward.3} parent=5 // pred_fallthru
        _
      %p259 = scmp.lt.s32.totalorder %s18, 2
      // Predicated region
      $region29: #{model_forward.3} parent=5 // pred_check
        %p260 = pneg %p259
      $region30: #{model_forward.3} parent=5 // pred_check_branch
        %262 = sbr.rel (%p260) target = $region32
      $region31: #{model_forward.3} parent=5 // pred_region
        // Predicated region
        $region33: #{model_forward.3} parent=31 // pred_check
          %p263 = pneg %p38
        $region34: #{model_forward.3} parent=31 // pred_check_branch
          %265 = sbr.rel (%p263) target = $region36
        $region35: #{model_forward.3} parent=31 // pred_region
          %p266 = scmp.lt.s32.totalorder %s18, 1
          %s267 = scalar_select %p266, %s18, 1
          %s268 = smul.addr %s267, 2
          %s269 = smul.addr %s268, 4
          %s270 = scalar_lea.vmem %s0, %s269
        $region36: #{model_forward.3} parent=31 // pred_fallthru
          _
        // Predicated region
        $region37: #{model_forward.3} parent=31 // pred_check
          %p271 = pneg %p64
        $region38: #{model_forward.3} parent=31 // pred_check_branch
          %273 = sbr.rel (%p271) target = $region40
        $region39: #{model_forward.3} parent=31 // pred_region
          %p274 = scmp.lt.s32.totalorder %s18, 1
          %s275 = scalar_select %p274, %s18, 1
          %s276 = scalar_lea.vmem %s1, %s275
        $region40: #{model_forward.3} parent=31 // pred_fallthru
          _
        // Predicated region
        $region41: #{model_forward.3} parent=31 // pred_check
          %p277 = pneg %p90
        $region42: #{model_forward.3} parent=31 // pred_check_branch
          %279 = sbr.rel (%p277) target = $region44
        $region43: #{model_forward.3} parent=31 // pred_region
          %p280 = scmp.lt.s32.totalorder %s18, 1
          %s281 = scalar_select %p280, %s18, 1
          %s282 = smul.addr %s281, 4
          %s283 = scalar_lea.vmem %s2, %s282
        $region44: #{model_forward.3} parent=31 // pred_fallthru
          _
      $region32: #{model_forward.3} parent=5 // pred_fallthru
        _
      %p284 = scmp.le.s32.totalorder 1, %s18
      %p285 = scmp.lt.s32.totalorder %s18, 3
      %p286 = pnand %p284, %p285
      %p287 = pneg %p286
      // Predicated region
      $region45: #{model_forward.3} parent=5 // pred_check
        _
      $region46: #{model_forward.3} parent=5 // pred_check_branch
        %289 = sbr.rel (%p286) target = $region48
      $region47: #{model_forward.3} parent=5 // pred_region
        %s290 = ssub.s32 %s18, 1
        %p291 = scmp.lt.s32.totalorder %s23, 1
        %s292 = scalar_select %p291, %s23, 1
        %s293 = smul.addr %s292, 2
        %s294 = smul.addr %s293, 4
        %s295 = scalar_lea.vmem %s0, %s294
        %p296 = pneg %p44
        %p297 = pneg %p41
        %p298 = scmp.lt.s32.totalorder %s23, 1
        %s299 = scalar_select %p298, %s23, 1
        %s300 = scalar_lea.vmem %s1, %s299
        %p301 = pneg %p70
        %p302 = pneg %p67
        %p303 = scmp.lt.s32.totalorder %s23, 1
        %s304 = scalar_select %p303, %s23, 1
        %s305 = smul.addr %s304, 4
        %s306 = scalar_lea.vmem %s2, %s305
        %p307 = pneg %p96
        %p308 = pneg %p93
        %p309 = pneg %p117
        %p310 = pneg %p114
        %p311 = pneg %p138
        %p312 = pneg %p135
        %p313 = pneg %p159
        %p314 = pneg %p156
        %p315 = pneg %p180
        %p316 = pneg %p177
        %p317 = pneg %p206
        %p318 = pneg %p203
        %s319 = sand.u32 %s193, 1
        %s320 = scalar_lea.sflag [#allocation3], %s319
        %s321 = sand.u32 %s193, 1
        %s322 = scalar_lea.vmem [#allocation2], %s321
        %p323 = pneg %p232
        %p324 = pneg %p229
        %p325 = scmp.lt.s32.totalorder %s23, 1
        %s326 = scalar_select %p325, %s23, 1
        %s327 = scalar_lea.vmem %s8, %s326
        %p328 = scmp.lt.s32.totalorder %s23, 1
        %s329 = scalar_select %p328, %s23, 1
        %s330 = smul.addr %s329, 2
        %s331 = smul.addr %s330, 4
        %s332 = scalar_lea.vmem %s0, %s331
        %p333 = scmp.lt.s32.totalorder %s23, 1
        %s334 = scalar_select %p333, %s23, 1
        %s335 = scalar_lea.vmem %s1, %s334
        %p336 = scmp.lt.s32.totalorder %s23, 1
        %s337 = scalar_select %p336, %s23, 1
        %s338 = smul.addr %s337, 4
        %s339 = scalar_lea.vmem %s2, %s338
        %p340 = scmp.lt.s32.totalorder %s23, 1
        %s341 = scalar_select %p340, %s23, 1
        %s342 = scalar_lea.vmem %s8, %s341
        %v344 = vld [vmem:[%s332] sm:$0xf]
        %v345 = vld [vmem:[%s332 + $0x4] sm:$0xf]
        %v346 = vld [vmem:[%s335] sm:$0x1]
        %v347 = vld [vmem:[%s339] sm:$0x7]
        %v348 = vld [vmem:[%s4] sm:$0x1]
        %v349 = vld [vmem:[%s5] sm:$0x1]
        %v350 = vld [vmem:[%s3] sm:$0xff]
        %v351 = vld [vmem:[%s3 + $0x8] sm:$0xf]
        %v352 = vld [vmem:[%s3 + $0xc] sm:$0xff]
        %v353 = vld [vmem:[%s3 + $0x14] sm:$0xf]
        %v354 = vld [vmem:[%s3 + $0x18] sm:$0xff]
        %v355 = vld [vmem:[%s3 + $0x20] sm:$0xf]
        %v356 = vld [vmem:[%s3 + $0x24] sm:$0xff]
        %v357 = vld [vmem:[%s3 + $0x2c] sm:$0xf]
        %v366 = vunpack.c.l.b16 %v350
        %v367 = vunpack.c.h.b16 %v350
        %v368 = vunpack.c.l.b16 %v351
        %v369 = vunpack.c.l.b16 %v352
        %v370 = vunpack.c.h.b16 %v352
        %v371 = vunpack.c.l.b16 %v353
        %v372 = vunpack.c.l.b16 %v354
        %v373 = vunpack.c.h.b16 %v354
        %v374 = vunpack.c.l.b16 %v355
        %v375 = vunpack.c.l.b16 %v356
        %v376 = vunpack.c.h.b16 %v356
        %v377 = vunpack.c.l.b16 %v357
        %v378 = vpack.c.b16 %v369, %v366
        %v379 = vpack.c.b16 %v370, %v367
        %v380 = vpack.c.b16 %v371, %v368
        %v381 = vpack.c.b16 %v375, %v372
        %v382 = vpack.c.b16 %v376, %v373
        %v383 = vpack.c.b16 %v377, %v374
        %vm390 = vcmask 261120
        %v392 = vsel %vm390, %v346, 0
        %394 = vmatpush.bf16.msra.mxu0 0
        %395 = vmatpush.bf16.msra.mxu0 0
        %396 = vmatpush.bf16.msra.mxu0 0
        %397 = vmatpush.bf16.msra.mxu0 0
        %398 = vmatpush.bf16.msra.mxu0 0
        %399 = vmatpush.bf16.msra.mxu0 0
        %400 = vmatpush.bf16.msra.mxu0 %v381
        %401 = vmatpush.bf16.msra.mxu0 %v378
        %402 = vmatmul.bf16.gmra.mxu0 %v392
        %v403 = vpop.f32.mrf.mxu0
        %v404 = vadd.f32 0.0, %v403
        %v405 = vpop.f32.mrf.mxu0
        %406 = vdwg.mxu0
        %407 = vmatpush.bf16.msra.mxu0 0
        %408 = vmatpush.bf16.msra.mxu0 0
        %409 = vmatpush.bf16.msra.mxu0 0
        %410 = vmatpush.bf16.msra.mxu0 0
        %411 = vmatpush.bf16.msra.mxu0 0
        %412 = vmatpush.bf16.msra.mxu0 0
        %413 = vmatpush.bf16.msra.mxu0 %v382
        %414 = vmatpush.bf16.msra.mxu0 %v379
        %415 = vmatmul.bf16.gmra.mxu0 %v392
        %v416 = vpop.f32.mrf.mxu0
        %v417 = vadd.f32 0.0, %v416
        %v418 = vpop.f32.mrf.mxu0
        %419 = vdwg.mxu0
        %420 = vmatpush.bf16.msra.mxu0 0
        %421 = vmatpush.bf16.msra.mxu0 0
        %422 = vmatpush.bf16.msra.mxu0 0
        %423 = vmatpush.bf16.msra.mxu0 0
        %424 = vmatpush.bf16.msra.mxu0 0
        %425 = vmatpush.bf16.msra.mxu0 0
        %426 = vmatpush.bf16.msra.mxu0 %v383
        %427 = vmatpush.bf16.msra.mxu0 %v380
        %428 = vmatmul.bf16.gmra.mxu0 %v392
        %v429 = vpop.f32.mrf.mxu0
        %v430 = vadd.f32 0.0, %v429
        %v431 = vpop.f32.mrf.mxu0
        %432 = vdwg.mxu0
        %v433 = vadd.f32 %v404, %v347
        %v434 = vmax.f32 %v433, 0.0
        %vm435 = vcmask 1040384
        %v436 = vsel %vm435, %v434, 0.0
        %437 = vadd.xlane.f32.xlu0 %v436
        %v438 = vpop.xlane.xlu0 %437
        %v439 = vrcp.pop 128.0
        %v440 = vmul.f32 128.0, %v439
        %v441 = vsub.f32 1.0, %v440
        %v442 = vmul.f32 %v439, %v441
        %v443 = vadd.f32 %v439, %v442
        %vm444 = vweird.f32 %v439
        %v445 = vsel %vm444, %v439, %v443
        %v446 = vmul.f32 %v438, %v445
        %v447 = vsub.f32 %v434, %v446
        %v448 = vmul.f32 %v447, %v447
        %v449 = vsel %vm435, %v448, 0.0
        %450 = vadd.xlane.f32.xlu0 %v449
        %v451 = vpop.xlane.xlu0 %450
        %v452 = vmul.f32 %v451, %v445
        %v453 = vadd.f32 %v452, 1e-05
        %v454 = vrsqrt.pop %v453
        %v455 = vmul.f32 %v454, %v453
        %v456 = vmul.f32 %v455, %v454
        %v457 = vmul.f32 0.5, %v456
        %v458 = vsub.f32 1.5, %v457
        %v459 = vmul.f32 %v454, %v458
        %vm460 = vweird.f32 %v453
        %vm461 = vweird.f32 %v454
        %vm462 = vmor %vm460, %vm461
        %v463 = vsel %vm462, %v454, %v459
        %v464 = vmul.f32 %v447, %v463
        %v465 = vmul.f32 %v464, %v348
        %v466 = vadd.f32 %v465, %v349
        %v467 = vmul.f32 %v466, 0.088388346
        %v469 = vrot.slane %v347, 1
        %v471 = vadd.f32 %v417, %v469
        %v472 = vmax.f32 %v471, 0.0
        %v473 = vsel %vm435, %v472, 0.0
        %474 = vadd.xlane.f32.xlu0 %v473
        %v475 = vpop.xlane.xlu0 %474
        %v476 = vmul.f32 %v475, %v445
        %v477 = vsub.f32 %v472, %v476
        %v478 = vmul.f32 %v477, %v477
        %v479 = vsel %vm435, %v478, 0.0
        %480 = vadd.xlane.f32.xlu0 %v479
        %v481 = vpop.xlane.xlu0 %480
        %v482 = vmul.f32 %v481, %v445
        %v483 = vadd.f32 %v482, 1e-05
        %v484 = vrsqrt.pop %v483
        %v485 = vmul.f32 %v484, %v483
        %v486 = vmul.f32 %v485, %v484
        %v487 = vmul.f32 0.5, %v486
        %v488 = vsub.f32 1.5, %v487
        %v489 = vmul.f32 %v484, %v488
        %vm490 = vweird.f32 %v483
        %vm491 = vweird.f32 %v484
        %vm492 = vmor %vm490, %vm491
        %v493 = vsel %vm492, %v484, %v489
        %v494 = vmul.f32 %v477, %v493
        %v495 = vmul.f32 %v494, %v348
        %v496 = vadd.f32 %v495, %v349
        %v497 = vrot.slane %v347, 2
        %v499 = vadd.f32 %v430, %v497
        %v500 = vmax.f32 %v499, 0.0
        %v501 = vsel %vm435, %v500, 0.0
        %502 = vadd.xlane.f32.xlu0 %v501
        %v503 = vpop.xlane.xlu0 %502
        %v504 = vmul.f32 %v503, %v445
        %v505 = vsub.f32 %v500, %v504
        %v506 = vmul.f32 %v505, %v505
        %v507 = vsel %vm435, %v506, 0.0
        %508 = vadd.xlane.f32.xlu0 %v507
        %v509 = vpop.xlane.xlu0 %508
        %v510 = vmul.f32 %v509, %v445
        %v511 = vadd.f32 %v510, 1e-05
        %v512 = vrsqrt.pop %v511
        %v513 = vmul.f32 %v512, %v511
        %v514 = vmul.f32 %v513, %v512
        %v515 = vmul.f32 0.5, %v514
        %v516 = vsub.f32 1.5, %v515
        %v517 = vmul.f32 %v512, %v516
        %vm518 = vweird.f32 %v511
        %vm519 = vweird.f32 %v512
        %vm520 = vmor %vm518, %vm519
        %v521 = vsel %vm520, %v512, %v517
        %v522 = vmul.f32 %v505, %v521
        %v523 = vmul.f32 %v522, %v348
        %v524 = vadd.f32 %v523, %v349
        %v527 = vunpack.c.l.b16 %v344
        %v528 = vunpack.c.l.b16 %v345
        %v529 = vpack.c.b16 %v528, %v527
        %v531 = vsel %vm390, %v529, 0
        %533 = vmatpush.bf16.msra.mxu0 0
        %534 = vmatpush.bf16.msra.mxu0 0
        %535 = vmatpush.bf16.msra.mxu0 0
        %536 = vmatpush.bf16.msra.mxu0 0
        %537 = vmatpush.bf16.msra.mxu0 0
        %538 = vmatpush.bf16.msra.mxu0 0
        %539 = vmatpush.bf16.msra.mxu0 %v382
        %540 = vmatpush.bf16.msra.mxu0 %v379
        %541 = vmatmul.bf16.gmra.mxu0 %v531
        %v542 = vpop.f32.mrf.mxu0
        %v543 = vadd.f32 0.0, %v542
        %v544 = vpop.f32.mrf.mxu0
        %v545 = vadd.f32 0.0, %v544
        %546 = vdwg.mxu0
        %547 = vmatpush.bf16.msra.mxu0 0
        %548 = vmatpush.bf16.msra.mxu0 0
        %549 = vmatpush.bf16.msra.mxu0 0
        %550 = vmatpush.bf16.msra.mxu0 0
        %551 = vmatpush.bf16.msra.mxu0 0
        %552 = vmatpush.bf16.msra.mxu0 0
        %553 = vmatpush.bf16.msra.mxu0 %v383
        %554 = vmatpush.bf16.msra.mxu0 %v380
        %555 = vmatmul.bf16.gmra.mxu0 %v531
        %v556 = vpop.f32.mrf.mxu0
        %v557 = vadd.f32 0.0, %v556
        %v558 = vpop.f32.mrf.mxu0
        %v559 = vadd.f32 0.0, %v558
        %560 = vdwg.mxu0
        %v561 = vperm.slane %v347, 1
        %v562 = vadd.f32 %v543, %v561
        %v563 = vadd.f32 %v545, %v561
        %v564 = vmax.f32 %v562, 0.0
        %v565 = vmax.f32 %v563, 0.0
        %566 = vadd.xlane.f32.xlu0 %v564
        %v567 = vpop.xlane.xlu0 %566
        %568 = vadd.xlane.f32.xlu0 %v565
        %v569 = vpop.xlane.xlu0 %568
        %v570 = vmul.f32 %v567, %v445
        %v571 = vmul.f32 %v569, %v445
        %v572 = vsub.f32 %v564, %v570
        %v573 = vsub.f32 %v565, %v571
        %v574 = vmul.f32 %v572, %v572
        %v575 = vmul.f32 %v573, %v573
        %576 = vadd.xlane.f32.xlu0 %v574
        %v577 = vpop.xlane.xlu0 %576
        %578 = vadd.xlane.f32.xlu0 %v575
        %v579 = vpop.xlane.xlu0 %578
        %v580 = vmul.f32 %v577, %v445
        %v581 = vmul.f32 %v579, %v445
        %v582 = vadd.f32 %v580, 1e-05
        %v583 = vadd.f32 %v581, 1e-05
        %v584 = vrsqrt.pop %v582
        %v585 = vmul.f32 %v584, %v582
        %v586 = vmul.f32 %v585, %v584
        %v587 = vmul.f32 0.5, %v586
        %v588 = vsub.f32 1.5, %v587
        %v589 = vmul.f32 %v584, %v588
        %vm590 = vweird.f32 %v582
        %vm591 = vweird.f32 %v584
        %vm592 = vmor %vm590, %vm591
        %v593 = vsel %vm592, %v584, %v589
        %v594 = vrsqrt.pop %v583
        %v595 = vmul.f32 %v594, %v583
        %v596 = vmul.f32 %v595, %v594
        %v597 = vmul.f32 0.5, %v596
        %v598 = vsub.f32 1.5, %v597
        %v599 = vmul.f32 %v594, %v598
        %vm600 = vweird.f32 %v583
        %vm601 = vweird.f32 %v594
        %vm602 = vmor %vm600, %vm601
        %v603 = vsel %vm602, %v594, %v599
        %v604 = vmul.f32 %v572, %v593
        %v605 = vmul.f32 %v573, %v603
        %v607 = vperm.slane %v348, 0
        %v609 = vmul.f32 %v604, %v607
        %v610 = vmul.f32 %v605, %v607
        %v612 = vperm.slane %v349, 0
        %v614 = vadd.f32 %v609, %v612
        %v615 = vadd.f32 %v610, %v612
        %v616 = vpack.c.bf16 %v615, %v614
        %v617 = vperm.slane %v347, 2
        %v618 = vadd.f32 %v557, %v617
        %v619 = vadd.f32 %v559, %v617
        %v620 = vmax.f32 %v618, 0.0
        %v621 = vmax.f32 %v619, 0.0
        %622 = vadd.xlane.f32.xlu0 %v620
        %v623 = vpop.xlane.xlu0 %622
        %624 = vadd.xlane.f32.xlu0 %v621
        %v625 = vpop.xlane.xlu0 %624
        %v626 = vmul.f32 %v623, %v445
        %v627 = vmul.f32 %v625, %v445
        %v628 = vsub.f32 %v620, %v626
        %v629 = vsub.f32 %v621, %v627
        %v630 = vmul.f32 %v628, %v628
        %v631 = vmul.f32 %v629, %v629
        %632 = vadd.xlane.f32.xlu0 %v630
        %v633 = vpop.xlane.xlu0 %632
        %634 = vadd.xlane.f32.xlu0 %v631
        %v635 = vpop.xlane.xlu0 %634
        %v636 = vmul.f32 %v633, %v445
        %v637 = vmul.f32 %v635, %v445
        %v638 = vadd.f32 %v636, 1e-05
        %v639 = vadd.f32 %v637, 1e-05
        %v640 = vrsqrt.pop %v638
        %v641 = vmul.f32 %v640, %v638
        %v642 = vmul.f32 %v641, %v640
        %v643 = vmul.f32 0.5, %v642
        %v644 = vsub.f32 1.5, %v643
        %v645 = vmul.f32 %v640, %v644
        %vm646 = vweird.f32 %v638
        %vm647 = vweird.f32 %v640
        %vm648 = vmor %vm646, %vm647
        %v649 = vsel %vm648, %v640, %v645
        %v650 = vrsqrt.pop %v639
        %v651 = vmul.f32 %v650, %v639
        %v652 = vmul.f32 %v651, %v650
        %v653 = vmul.f32 0.5, %v652
        %v654 = vsub.f32 1.5, %v653
        %v655 = vmul.f32 %v650, %v654
        %vm656 = vweird.f32 %v639
        %vm657 = vweird.f32 %v650
        %vm658 = vmor %vm656, %vm657
        %v659 = vsel %vm658, %v650, %v655
        %v660 = vmul.f32 %v628, %v649
        %v661 = vmul.f32 %v629, %v659
        %v662 = vmul.f32 %v660, %v607
        %v663 = vmul.f32 %v661, %v607
        %v664 = vadd.f32 %v662, %v612
        %v665 = vadd.f32 %v663, %v612
        %v666 = vpack.c.bf16 %v665, %v664
        %v667 = vpack.c.bf16 %v467, %v467
        %668 = vmatpush.bf16.xpose.msra.mxu0 0
        %669 = vmatpush.bf16.xpose.msra.mxu0 0
        %670 = vmatpush.bf16.xpose.msra.mxu0 0
        %671 = vmatpush.bf16.xpose.msra.mxu0 0
        %672 = vmatpush.bf16.xpose.msra.mxu0 0
        %673 = vmatpush.bf16.xpose.msra.mxu0 0
        %674 = vmatpush.bf16.xpose.msra.mxu0 0
        %675 = vmatpush.bf16.xpose.msra.mxu0 %v616
        %676 = vmatmul.bf16.gmra.mxu0 %v667
        %v677 = vpop.f32.mrf.mxu0
        %v678 = vadd.f32 0.0, %v677
        %v679 = vpop.f32.mrf.mxu0
        %680 = vdwg.mxu0
        %v681 = vmul.f32 %v467, %v496
        %v682 = vsel %vm435, %v681, 0.0
        %683 = vadd.xlane.f32.xlu0 %v682
        %v684 = vpop.xlane.xlu0 %683
        %vm685 = vcmask 122880
        %v686 = vsel %vm685, %v678, -inf
        %687 = vmax.xlane.f32.xlu0 %v686
        %v688 = vpop.xlane.xlu0 %687
        %v689 = vmax.f32 %v688, %v684
        %v690 = vsub.f32 %v678, %v689
        %v691 = vmul.f32 %v690, 1.442695
        %v692 = vpow.pop %v691
        %v693 = vsub.f32 %v684, %v689
        %v694 = vmul.f32 %v693, 1.442695
        %v695 = vpow.pop %v694
        %v696 = vsel %vm685, %v692, 0.0
        %697 = vadd.xlane.f32.xlu0 %v696
        %v698 = vpop.xlane.xlu0 %697
        %v699 = vadd.f32 %v695, %v698
        %v700 = vrcp.pop %v699
        %v701 = vmul.f32 %v699, %v700
        %v702 = vsub.f32 1.0, %v701
        %v703 = vmul.f32 %v700, %v702
        %v704 = vadd.f32 %v700, %v703
        %vm705 = vweird.f32 %v699
        %vm706 = vweird.f32 %v700
        %vm707 = vmor %vm705, %vm706
        %v708 = vsel %vm707, %v700, %v704
        %v709 = vand.u32 2147483647, %v699
        %vm710 = vcmp.eq.f32.partialorder %v709, 8.507059e+37
        %v711 = vand.u32 %v699, 2147483648
        %v712 = vor.u32 1.1754944e-38, %v711
        %v713 = vsel %vm710, %v712, %v708
        %v714 = vmul.f32 1.0, %v713
        %v715 = vmul.f32 %v692, %v714
        %v716 = vmul.f32 %v695, %v714
        %v717 = vmul.f32 %v716, %v524
        %v718 = vpack.c.bf16 %v715, %v715
        %vm719 = vcmask 130048
        %v721 = vsel %vm719, %v718, 0
        %723 = vmatpush.bf16.msra.mxu0 0
        %724 = vmatpush.bf16.msra.mxu0 0
        %725 = vmatpush.bf16.msra.mxu0 0
        %726 = vmatpush.bf16.msra.mxu0 0
        %727 = vmatpush.bf16.msra.mxu0 0
        %728 = vmatpush.bf16.msra.mxu0 0
        %729 = vmatpush.bf16.msra.mxu0 0
        %730 = vmatpush.bf16.msra.mxu0 %v666
        %731 = vmatmul.bf16.gmra.mxu0 %v721
        %v732 = vpop.f32.mrf.mxu0
        %v733 = vadd.f32 0.0, %v732
        %v734 = vpop.f32.mrf.mxu0
        %735 = vdwg.mxu0
        %v736 = vadd.f32 %v717, %v733
        %v737 = vpack.c.bf16 %v736, %v736
        %v738 = vld [vmem:[%s6] sm:$0xf]
        %v739 = vld [vmem:[%s6 + $0x4] sm:$0xf]
        %v740 = vld [vmem:[%s6 + $0x8] sm:$0xf]
        %v741 = vld [vmem:[%s6 + $0xc] sm:$0xf]
        %v742 = vld [vmem:[%s6 + $0x10] sm:$0xf]
        %v743 = vld [vmem:[%s6 + $0x14] sm:$0xf]
        %v744 = vld [vmem:[%s6 + $0x18] sm:$0xf]
        %v745 = vld [vmem:[%s6 + $0x1c] sm:$0xf]
        %v746 = vld [vmem:[%s6 + $0x20] sm:$0xf]
        %v747 = vld [vmem:[%s6 + $0x24] sm:$0xf]
        %v748 = vld [vmem:[%s6 + $0x28] sm:$0xf]
        %v749 = vld [vmem:[%s6 + $0x2c] sm:$0xf]
        %v750 = vld [vmem:[%s6 + $0x30] sm:$0xf]
        %v751 = vld [vmem:[%s6 + $0x34] sm:$0xf]
        %v752 = vld [vmem:[%s6 + $0x38] sm:$0xf]
        %v753 = vld [vmem:[%s6 + $0x3c] sm:$0xf]
        %v770 = vunpack.c.l.b16 %v738
        %v771 = vunpack.c.l.b16 %v739
        %v772 = vunpack.c.l.b16 %v740
        %v773 = vunpack.c.l.b16 %v741
        %v774 = vunpack.c.l.b16 %v742
        %v775 = vunpack.c.l.b16 %v743
        %v776 = vunpack.c.l.b16 %v744
        %v777 = vunpack.c.l.b16 %v745
        %v778 = vunpack.c.l.b16 %v746
        %v779 = vunpack.c.l.b16 %v747
        %v780 = vunpack.c.l.b16 %v748
        %v781 = vunpack.c.l.b16 %v749
        %v782 = vunpack.c.l.b16 %v750
        %v783 = vunpack.c.l.b16 %v751
        %v784 = vunpack.c.l.b16 %v752
        %v785 = vunpack.c.l.b16 %v753
        %v786 = vpack.c.b16 %v771, %v770
        %v787 = vpack.c.b16 %v773, %v772
        %v788 = vpack.c.b16 %v775, %v774
        %v789 = vpack.c.b16 %v777, %v776
        %v790 = vpack.c.b16 %v779, %v778
        %v791 = vpack.c.b16 %v781, %v780
        %v792 = vpack.c.b16 %v783, %v782
        %v793 = vpack.c.b16 %v785, %v784
        %802 = vmatpush.bf16.msra.mxu0 %v793
        %803 = vmatpush.bf16.msra.mxu0 %v792
        %804 = vmatpush.bf16.msra.mxu0 %v791
        %805 = vmatpush.bf16.msra.mxu0 %v790
        %806 = vmatpush.bf16.msra.mxu0 %v789
        %807 = vmatpush.bf16.msra.mxu0 %v788
        %808 = vmatpush.bf16.msra.mxu0 %v787
        %809 = vmatpush.bf16.msra.mxu0 %v786
        %810 = vmatmul.bf16.gmra.mxu0 %v737
        %v811 = vpop.f32.mrf.mxu0
        %v812 = vadd.f32 0.0, %v811
        %v813 = vpop.f32.mrf.mxu0
        %814 = vdwg.mxu0
        %vm815 = vcmask 253952
        %816 = vst.msk [vmem:[%s322] sm:$0x1] %vm815, %v812
        %817 = vst.msk [vmem:[%s342] sm:$0x1] %vm685, %v715
        %s818 = sand.u32 %s193, 1
        %s819 = scalar_lea.sflag [#allocation3], %s818
        %s820 = sand.u32 %s193, 1
        %s821 = scalar_lea.vmem [#allocation2], %s820
        %p822 = scmp.lt.s32.totalorder %s23, 1
        %s823 = scalar_select %p822, %s23, 1
        %s824 = scalar_lea.vmem %s8, %s823
        // Predicated region
        $region49: #{model_forward.3} parent=47 // pred_check
          %p825 = pneg %p203
        $region50: #{model_forward.3} parent=47 // pred_check_branch
          %827 = sbr.rel (%p825) target = $region52
        $region51: #{model_forward.3} parent=47 // pred_region
          %829 = vsyncadd %s819, 0
          %s830 = scalar_lea.hbm %s7, %s23
          %s832 = sshll.u32 %s821, 4
          %s833 = int_to_ptr.vmem [resolvable:$true] %s832
          %s834 = sshll.u32 %s830, 4
          %s835 = int_to_ptr.hbm [resolvable:$true] %s834
          %837 = dma.vmem_to_hbm [thread:$0]  %s833, 16, %s835, %s819
        $region52: #{model_forward.3} parent=47 // pred_fallthru
          _
        // Predicated region
        $region53: #{model_forward.3} parent=47 // pred_check
          %p838 = pneg %p229
        $region54: #{model_forward.3} parent=47 // pred_check_branch
          %840 = sbr.rel (%p838) target = $region56
        $region55: #{model_forward.3} parent=47 // pred_region
          _
        $region56: #{model_forward.3} parent=47 // pred_fallthru
          _
      $region48: #{model_forward.3} parent=5 // pred_fallthru
        _
      %p841 = scmp.le.s32.totalorder 2, %s18
      // Predicated region
      $region57: #{model_forward.3} parent=5 // pred_check
        %p842 = pneg %p841
      $region58: #{model_forward.3} parent=5 // pred_check_branch
        %844 = sbr.rel (%p842) target = $region60
      $region59: #{model_forward.3} parent=5 // pred_region
        %s845 = ssub.s32 %s18, 2
        // Predicated region
        $region61: #{model_forward.3} parent=59 // pred_check
          %p846 = pneg %p209
        $region62: #{model_forward.3} parent=59 // pred_check_branch
          %848 = sbr.rel (%p846) target = $region64
        $region63: #{model_forward.3} parent=59 // pred_region
          %s849 = sand.u32 %s194, 1
          %s850 = scalar_lea.sflag [#allocation3], %s849
          %s851 = sand.u32 %s194, 1
          %s852 = scalar_lea.vmem [#allocation2], %s851
          %854 = dma.done %s850, 16
        $region64: #{model_forward.3} parent=59 // pred_fallthru
          _
        // Predicated region
        $region65: #{model_forward.3} parent=59 // pred_check
          %p855 = pneg %p235
        $region66: #{model_forward.3} parent=59 // pred_check_branch
          %857 = sbr.rel (%p855) target = $region68
        $region67: #{model_forward.3} parent=59 // pred_region
          %p858 = scmp.lt.s32.totalorder %s24, 1
          %s859 = scalar_select %p858, %s24, 1
          %s860 = scalar_lea.vmem %s8, %s859
        $region68: #{model_forward.3} parent=59 // pred_fallthru
          _
      $region60: #{model_forward.3} parent=5 // pred_fallthru
        _
    $region6: #{model_forward.3} parent=1 // loop_footer
      %s22 = sadd.s32 1, %s18
    $region7: #{model_forward.3} parent=1 // loop_footer_branch
      %17 = sbr.rel target = $region3
    $region8: #{model_forward.3} parent=1 // loop_exit
      _
    %861 = vsyncpa [#allocation3], 1
    %s862 = scalar_lea.sflag [#allocation3], 1
    %863 = vsyncpa %s862, 1

</llo_original>
